<compile_context>
chip_gen: v6e
topology: v6e:2x2x1
jax: 0.10.0
libtpu: 0.0.40
codegen_flags: <defaults>
</compile_context>

<pallas_src>
import math

import jax
import jax.numpy as jnp
from jax import lax
from jax.experimental import pallas as pl
from jax.experimental.pallas import tpu as pltpu

D_MODEL = 32
NHEAD = 4
DIM_FF = 16
HEAD_DIM = D_MODEL // NHEAD
NEG_SLOPE = 1.0  # nn.LeakyReLU(True) -> negative_slope == 1.0 (identity)

# ----- packed-parameter layout: ONE (232, 128) f32 slab -----------------------
# Every weight block is 32 sublane rows tall, starts at lane 0.
_E = D_MODEL
LANES = 128                     # H * E — full-vreg lane width, unmasked loads
R_VO_S = 0                      # Wvo_s = per-head Wv_s@Wo_s, lane-concat (32,128)
R_VO_C = 32                     # Wvo_c                                   (32,128)
R_QK_S = 64                     # [Wq_s | Wk_s] lanes 0..63               (32, 64)
R_Q_C = 96                      # Wq_c lanes 0..31
R_K_C = 128                     # Wk_c lanes 0..31
R_FF1 = 160                     # W1 zero-padded to (32,32), lanes 0..31
R_FF2 = 192                     # W2 zero-padded to (32,32), lanes 0..31
R_BIAS = 224                    # 8 bias rows (7 used), each at lane offset 0:
#   row 224: [bq_s | bk_s]  (1,64)
#   row 225: bq_c           (1,32)
#   row 226: bk_c           (1,32)
#   row 227: bvo_s = bv_s@Wo_s + bo_s   (1,32)
#   row 228: bvo_c = bv_c@Wo_c + bo_c   (1,32)
#   row 229: b1 zero-padded (1,32)
#   row 230: b2             (1,32)
PACK_ROWS = R_BIAS + 8          # 232 (multiple of 8)


# ----------------------------- kernel ---------------------------------------

def _make_kernel(L, S, N, E, H):
    Dh = E // H
    scale = 1.0 / math.sqrt(Dh)
    nq = L * N
    nk = S * N
    neg = float(jnp.finfo(jnp.float32).min) / 2  # dtype-aware "-inf" stand-in

    def batch_mask(rows, cols):
        # Additive mask: token i (batch i % N) may only attend to token j of
        # the same batch.  Built once from 2-D iotas -> pure VPU work.
        qi = lax.broadcasted_iota(jnp.int32, (rows, cols), 0)
        kj = lax.broadcasted_iota(jnp.int32, (rows, cols), 1)
        if N & (N - 1) == 0:                       # power-of-two batch: 1-op test
            same = ((qi ^ kj) & (N - 1)) == 0
        else:
            same = (qi % N) == (kj % N)
        return jnp.where(same, 0.0, neg).astype(jnp.float32)

    def attention(q, k, vo, bvo, mask):
        # vo = kv_src @ Wvo  (nk, H*E): V and O projections pre-folded per head.
        q = q * scale
        acc = None
        for h in range(H):                                  # static unroll
            sl = slice(h * Dh, (h + 1) * Dh)
            # scores = q_h @ k_h^T without an explicit transpose
            s = lax.dot_general(q[:, sl], k[:, sl],
                                (((1,), (1,)), ((), ())),
                                preferred_element_type=jnp.float32)
            s = s + mask
            s = s - jnp.max(s, axis=-1, keepdims=True)
            p = jnp.exp(s)
            # exact divide: bias folding through Wo relies on rows summing to 1
            p = p / jnp.sum(p, axis=-1, keepdims=True)
            contrib = jnp.dot(p, vo[:, h * E:(h + 1) * E],
                              preferred_element_type=jnp.float32)
            acc = contrib if acc is None else acc + contrib
        return acc + bvo

    def kernel(xm_ref, w_ref, out_ref):
        # ---- weight / bias slices (all sublane-aligned, lane offset 0) ------
        w_vo_s = w_ref[R_VO_S:R_VO_S + E, :]          # (32, 128)
        w_vo_c = w_ref[R_VO_C:R_VO_C + E, :]          # (32, 128)
        w_qk_s = w_ref[R_QK_S:R_QK_S + E, 0:2 * E]    # (32, 64)
        w_q_c = w_ref[R_Q_C:R_Q_C + E, 0:E]           # (32, 32)
        w_k_c = w_ref[R_K_C:R_K_C + E, 0:E]           # (32, 32)
        w_ff1 = w_ref[R_FF1:R_FF1 + E, 0:E]           # (32, 32) cols 16.. zero
        w_ff2 = w_ref[R_FF2:R_FF2 + E, 0:E]           # (32, 32) rows 16.. zero
        b_qk_s = w_ref[R_BIAS + 0:R_BIAS + 1, 0:2 * E]
        b_q_c = w_ref[R_BIAS + 1:R_BIAS + 2, 0:E]
        b_k_c = w_ref[R_BIAS + 2:R_BIAS + 3, 0:E]
        b_vo_s = w_ref[R_BIAS + 3:R_BIAS + 4, 0:E]
        b_vo_c = w_ref[R_BIAS + 4:R_BIAS + 5, 0:E]
        b_ff1 = w_ref[R_BIAS + 5:R_BIAS + 6, 0:E]
        b_ff2 = w_ref[R_BIAS + 6:R_BIAS + 7, 0:E]

        # ---- activations: tgt rows 0..nq-1, memory rows nq.. (one DMA) ------
        x = xm_ref[0:nq, :].astype(jnp.float32)       # (L*N, E)
        m = xm_ref[nq:nq + nk, :].astype(jnp.float32) # (S*N, E)

        mask_s = batch_mask(nq, nq)
        mask_c = mask_s if nk == nq else batch_mask(nq, nk)

        # 1) self-attention (fused QK projection, folded Vo) + residual
        qk = jnp.dot(x, w_qk_s, preferred_element_type=jnp.float32) + b_qk_s
        vo_s = jnp.dot(x, w_vo_s, preferred_element_type=jnp.float32)
        x = x + attention(qk[:, 0:E], qk[:, E:2 * E], vo_s, b_vo_s, mask_s)

        # 2) cross-attention (Q from x, K/Vo from memory) + residual
        qc = jnp.dot(x, w_q_c, preferred_element_type=jnp.float32) + b_q_c
        kc = jnp.dot(m, w_k_c, preferred_element_type=jnp.float32) + b_k_c
        vo_c = jnp.dot(m, w_vo_c, preferred_element_type=jnp.float32)
        x = x + attention(qc, kc, vo_c, b_vo_c, mask_c)

        # 3) feed-forward + residual.  nn.LeakyReLU(True) has negative_slope
        #    == 1.0, i.e. identity -> the where() is elided (zero semantic change).
        h = jnp.dot(x, w_ff1, preferred_element_type=jnp.float32) + b_ff1
        y = jnp.dot(h, w_ff2, preferred_element_type=jnp.float32) + b_ff2

        out_ref[...] = (x + y).astype(out_ref.dtype)

    return kernel


# ----------------------------- wrapper ---------------------------------------

@jax.jit
def transformer_decoder_layer(tgt, memory, w_packed):
    """tgt: (L, N, E), memory: (S, N, E) — PyTorch seq-first layout.

    No transposes: the row-major reshape (L, N, E) -> (L*N, E) is free; tgt and
    memory are stacked into one slab so the call has only TWO input DMAs
    (activations + packed weights/biases).  Batch separation happens inside
    the kernel via an additive block mask on the attention scores.
    """
    L, N, E = tgt.shape
    S = memory.shape[0]
    assert E == D_MODEL

    xm = jnp.concatenate(
        [tgt.reshape(L * N, E), memory.reshape(S * N, E)], axis=0)

    kernel = _make_kernel(L, S, N, E, NHEAD)
    rows = L * N + S * N

    out2d = pl.pallas_call(
        kernel,
        out_shape=jax.ShapeDtypeStruct((L * N, E), tgt.dtype),
        grid=(1,),
        in_specs=[
            pl.BlockSpec((rows, E), lambda i: (0, 0)),
            pl.BlockSpec((PACK_ROWS, LANES), lambda i: (0, 0)),
        ],
        out_specs=pl.BlockSpec((L * N, E), lambda i: (0, 0)),
        compiler_params=pltpu.CompilerParams(
            dimension_semantics=("arbitrary",)),
    )(xm, w_packed)

    return out2d.reshape(L, N, E)


# ----------------------------- params, packing & reference --------------------

def init_params(key):
    """Deterministic synthetic parameters (weights stored (in_dim, out_dim) so
    the math is x @ W + b; biases stored (1, dim))."""
    p = {}
    specs = {
        "wq_s": (D_MODEL, D_MODEL), "wk_s": (D_MODEL, D_MODEL),
        "wv_s": (D_MODEL, D_MODEL), "wo_s": (D_MODEL, D_MODEL),
        "bq_s": (1, D_MODEL), "bk_s": (1, D_MODEL),
        "bv_s": (1, D_MODEL), "bo_s": (1, D_MODEL),
        "wq_c": (D_MODEL, D_MODEL), "wk_c": (D_MODEL, D_MODEL),
        "wv_c": (D_MODEL, D_MODEL), "wo_c": (D_MODEL, D_MODEL),
        "bq_c": (1, D_MODEL), "bk_c": (1, D_MODEL),
        "bv_c": (1, D_MODEL), "bo_c": (1, D_MODEL),
        "w1": (D_MODEL, DIM_FF), "b1": (1, DIM_FF),
        "w2": (DIM_FF, D_MODEL), "b2": (1, D_MODEL),
    }
    keys = jax.random.split(key, len(specs))
    for k, (name, shape) in zip(keys, sorted(specs.items())):
        fan_in = shape[0] if len(shape) == 2 and shape[0] > 1 else D_MODEL
        p[name] = jax.random.normal(k, shape, jnp.float32) / math.sqrt(fan_in)
    return p


def pack_params(p):
    """Fold Wv·Wo (per head) and bv·Wo + bo at pack time, then pack everything
    (weights + biases) into ONE (232, 128) f32 slab.  Done once, outside the
    kernel."""
    E, H, Dh, F = D_MODEL, NHEAD, HEAD_DIM, DIM_FF

    def fold_vo(wv, wo, bv, bo):
        wvo = jnp.concatenate(
            [wv[:, h * Dh:(h + 1) * Dh] @ wo[h * Dh:(h + 1) * Dh, :]
             for h in range(H)], axis=1)          # (E, H*E) = (32, 128)
        bvo = bv @ wo + bo                        # (1, E): softmax rows sum to 1
        return wvo, bvo

    wvo_s, bvo_s = fold_vo(p["wv_s"], p["wo_s"], p["bv_s"], p["bo_s"])
    wvo_c, bvo_c = fold_vo(p["wv_c"], p["wo_c"], p["bv_c"], p["bo_c"])

    w1_pad = jnp.zeros((E, E), jnp.float32).at[:, :F].set(p["w1"])
    w2_pad = jnp.zeros((E, E), jnp.float32).at[:F, :].set(p["w2"])
    b1_pad = jnp.zeros((1, E), jnp.float32).at[:, :F].set(p["b1"])

    def block(mat):   # (E, w) matrix -> (E, 128) block, lane offset 0
        return jnp.zeros((E, LANES), jnp.float32).at[:, :mat.shape[1]].set(mat)

    def brow(vec):    # (1, w) bias row -> (1, 128) row, lane offset 0
        return jnp.zeros((1, LANES), jnp.float32).at[:, :vec.shape[1]].set(vec)

    W = jnp.concatenate(
        [
            block(wvo_s),                                          # rows   0..31
            block(wvo_c),                                          # rows  32..63
            block(jnp.concatenate([p["wq_s"], p["wk_s"]], axis=1)),# rows  64..95
            block(p["wq_c"]),                                      # rows  96..127
            block(p["wk_c"]),                                      # rows 128..159
            block(w1_pad),                                         # rows 160..191
            block(w2_pad),                                         # rows 192..223
            brow(jnp.concatenate([p["bq_s"], p["bk_s"]], axis=1)), # row 224
            brow(p["bq_c"]),                                       # row 225
            brow(p["bk_c"]),                                       # row 226
            brow(bvo_s),                                           # row 227
            brow(bvo_c),                                           # row 228
            brow(b1_pad),                                          # row 229
            brow(p["b2"]),                                         # row 230
            jnp.zeros((1, LANES), jnp.float32),                    # row 231 pad
        ],
        axis=0)
    assert W.shape == (PACK_ROWS, LANES)
    return W


def _ref_mha(q_in, k_in, v_in, p, tag):
    q = q_in @ p[f"wq_{tag}"] + p[f"bq_{tag}"]
    k = k_in @ p[f"wk_{tag}"] + p[f"bk_{tag}"]
    v = v_in @ p[f"wv_{tag}"] + p[f"bv_{tag}"]
    scale = 1.0 / math.sqrt(HEAD_DIM)
    outs = []
    for h in range(NHEAD):
        sl = slice(h * HEAD_DIM, (h + 1) * HEAD_DIM)
        s = (q[:, sl] * scale) @ k[:, sl].T
        outs.append(jax.nn.softmax(s, axis=-1) @ v[:, sl])
    return jnp.concatenate(outs, axis=-1) @ p[f"wo_{tag}"] + p[f"bo_{tag}"]


def reference(tgt, memory, p):
    L, N, E = tgt.shape
    outs = []
    for b in range(N):
        t, m = tgt[:, b, :], memory[:, b, :]
        t = t + _ref_mha(t, t, t, p, "s")
        t = t + _ref_mha(t, m, m, p, "c")
        h = t @ p["w1"] + p["b1"]
        h = jnp.where(h >= 0, h, NEG_SLOPE * h)   # LeakyReLU(slope=1) == identity
        t = t + (h @ p["w2"] + p["b2"])
        outs.append(t)
    return jnp.stack(outs, axis=1)


# ----------------------------- main -------------------------------------------

if __name__ == "__main__":
    key = jax.random.PRNGKey(0)
    k_p, k_t, k_m = jax.random.split(key, 3)

    L, S, N = 8, 8, 2             # tgt seq, memory seq, batch
    params = init_params(k_p)
    W_packed = pack_params(params)

    tgt = jax.random.normal(k_t, (L, N, D_MODEL), jnp.float32)
    memory = jax.random.normal(k_m, (S, N, D_MODEL), jnp.float32)

    out = transformer_decoder_layer(tgt, memory, W_packed)
    out = jax.block_until_ready(out)

    ref = reference(tgt, memory, params)
    assert out.shape == (L, N, D_MODEL)
    # exact-divide softmax + pre-folded Wv·Wo: only fp reassociation error left.
    assert jnp.allclose(out, ref, rtol=1e-3, atol=1e-3), "mismatch vs pure-JAX reference"

    print("KERNEL_OK")
</pallas_src>

<mosaic_0001>
module attributes {stable_mosaic.version = 11 : i64} {
  func.func @kernel(%arg0: i32, %arg1: memref<32x32xf32, #tpu.memory_space<vmem>>, %arg2: memref<232x128xf32, #tpu.memory_space<vmem>>, %arg3: memref<16x32xf32, #tpu.memory_space<vmem>>) attributes {dimension_semantics = [#tpu.dimension_semantics<arbitrary>], iteration_bounds = array<i64: 1>, scalar_prefetch = 0 : i64, scratch_operands = 0 : i64, tpu.core_type = #tpu.core_type<tc>, window_params = [{pipeline_mode = #tpu.pipeline_mode<synchronous>, transform_indices = @transform_0, window_bounds = array<i64: 32, 32>}, {pipeline_mode = #tpu.pipeline_mode<synchronous>, transform_indices = @transform_1, window_bounds = array<i64: 232, 128>}, {pipeline_mode = #tpu.pipeline_mode<synchronous>, transform_indices = @transform_2, window_bounds = array<i64: 16, 32>}]} {
    %c0 = arith.constant 0 : index
    %c0_0 = arith.constant 0 : index
    %0 = vector.load %arg2[%c0, %c0_0] : memref<232x128xf32, #tpu.memory_space<vmem>>, vector<32x128xf32>
    %c32 = arith.constant 32 : index
    %c0_1 = arith.constant 0 : index
    %1 = vector.load %arg2[%c32, %c0_1] : memref<232x128xf32, #tpu.memory_space<vmem>>, vector<32x128xf32>
    %c64 = arith.constant 64 : index
    %c0_2 = arith.constant 0 : index
    %2 = vector.load %arg2[%c64, %c0_2] : memref<232x128xf32, #tpu.memory_space<vmem>>, vector<32x64xf32>
    %c96 = arith.constant 96 : index
    %c0_3 = arith.constant 0 : index
    %3 = vector.load %arg2[%c96, %c0_3] : memref<232x128xf32, #tpu.memory_space<vmem>>, vector<32x32xf32>
    %c128 = arith.constant 128 : index
    %c0_4 = arith.constant 0 : index
    %4 = vector.load %arg2[%c128, %c0_4] : memref<232x128xf32, #tpu.memory_space<vmem>>, vector<32x32xf32>
    %c160 = arith.constant 160 : index
    %c0_5 = arith.constant 0 : index
    %5 = vector.load %arg2[%c160, %c0_5] : memref<232x128xf32, #tpu.memory_space<vmem>>, vector<32x32xf32>
    %c192 = arith.constant 192 : index
    %c0_6 = arith.constant 0 : index
    %6 = vector.load %arg2[%c192, %c0_6] : memref<232x128xf32, #tpu.memory_space<vmem>>, vector<32x32xf32>
    %c224 = arith.constant 224 : index
    %c0_7 = arith.constant 0 : index
    %7 = vector.load %arg2[%c224, %c0_7] : memref<232x128xf32, #tpu.memory_space<vmem>>, vector<1x64xf32>
    %c225 = arith.constant 225 : index
    %c0_8 = arith.constant 0 : index
    %8 = vector.load %arg2[%c225, %c0_8] : memref<232x128xf32, #tpu.memory_space<vmem>>, vector<1x32xf32>
    %c226 = arith.constant 226 : index
    %c0_9 = arith.constant 0 : index
    %9 = vector.load %arg2[%c226, %c0_9] : memref<232x128xf32, #tpu.memory_space<vmem>>, vector<1x32xf32>
    %c227 = arith.constant 227 : index
    %c0_10 = arith.constant 0 : index
    %10 = vector.load %arg2[%c227, %c0_10] : memref<232x128xf32, #tpu.memory_space<vmem>>, vector<1x32xf32>
    %c228 = arith.constant 228 : index
    %c0_11 = arith.constant 0 : index
    %11 = vector.load %arg2[%c228, %c0_11] : memref<232x128xf32, #tpu.memory_space<vmem>>, vector<1x32xf32>
    %c229 = arith.constant 229 : index
    %c0_12 = arith.constant 0 : index
    %12 = vector.load %arg2[%c229, %c0_12] : memref<232x128xf32, #tpu.memory_space<vmem>>, vector<1x32xf32>
    %c230 = arith.constant 230 : index
    %c0_13 = arith.constant 0 : index
    %13 = vector.load %arg2[%c230, %c0_13] : memref<232x128xf32, #tpu.memory_space<vmem>>, vector<1x32xf32>
    %c0_14 = arith.constant 0 : index
    %c0_15 = arith.constant 0 : index
    %14 = vector.load %arg1[%c0_14, %c0_15] : memref<32x32xf32, #tpu.memory_space<vmem>>, vector<16x32xf32>
    %c16 = arith.constant 16 : index
    %c0_16 = arith.constant 0 : index
    %15 = vector.load %arg1[%c16, %c0_16] : memref<32x32xf32, #tpu.memory_space<vmem>>, vector<16x32xf32>
    %16 = tpu.iota {dimensions = array<i32: 0>} : vector<16x16xi32>
    %17 = tpu.iota {dimensions = array<i32: 1>} : vector<16x16xi32>
    %18 = arith.xori %16, %17 : vector<16x16xi32>
    %c1_i32 = arith.constant 1 : i32
    %19 = vector.broadcast %c1_i32 : i32 to vector<16x16xi32>
    %20 = arith.andi %18, %19 : vector<16x16xi32>
    %c0_i32 = arith.constant 0 : i32
    %21 = vector.broadcast %c0_i32 : i32 to vector<16x16xi32>
    %22 = arith.cmpi eq, %20, %21 : vector<16x16xi32>
    %cst = arith.constant 0.000000e+00 : f32
    %cst_17 = arith.constant -1.70141173E+38 : f32
    %23 = vector.broadcast %cst : f32 to vector<16x16xf32>
    %24 = vector.broadcast %cst_17 : f32 to vector<16x16xf32>
    %25 = arith.select %22, %23, %24 : vector<16x16xi1>, vector<16x16xf32>
    %cst_18 = arith.constant dense<0.000000e+00> : vector<16x64xf32>
    %26 = tpu.matmul %14, %2, %cst_18 {dimension_numbers = #tpu.dot_dimension_numbers<[1], [0], [0], [1], [0, 0, 1, 1], [], []>} : vector<16x32xf32>, vector<32x64xf32>, vector<16x64xf32> -> vector<16x64xf32>
    %27 = vector.broadcast %7 : vector<1x64xf32> to vector<16x64xf32>
    %28 = arith.addf %26, %27 : vector<16x64xf32>
    %cst_19 = arith.constant dense<0.000000e+00> : vector<16x128xf32>
    %29 = tpu.matmul %14, %0, %cst_19 {dimension_numbers = #tpu.dot_dimension_numbers<[1], [0], [0], [1], [0, 0, 1, 1], [], []>} : vector<16x32xf32>, vector<32x128xf32>, vector<16x128xf32> -> vector<16x128xf32>
    %30 = vector.extract_strided_slice %28 {offsets = [0, 0], sizes = [16, 32], strides = [1, 1]} : vector<16x64xf32> to vector<16x32xf32>
    %31 = vector.extract_strided_slice %28 {offsets = [0, 32], sizes = [16, 32], strides = [1, 1]} : vector<16x64xf32> to vector<16x32xf32>
    %cst_20 = arith.constant 0.353553385 : f32
    %32 = vector.broadcast %cst_20 : f32 to vector<16x32xf32>
    %33 = arith.mulf %30, %32 : vector<16x32xf32>
    %34 = vector.extract_strided_slice %33 {offsets = [0, 0], sizes = [16, 8], strides = [1, 1]} : vector<16x32xf32> to vector<16x8xf32>
    %35 = vector.extract_strided_slice %31 {offsets = [0, 0], sizes = [16, 8], strides = [1, 1]} : vector<16x32xf32> to vector<16x8xf32>
    %cst_21 = arith.constant dense<0.000000e+00> : vector<16x16xf32>
    %36 = tpu.matmul %34, %35, %cst_21 {dimension_numbers = #tpu.dot_dimension_numbers<[1], [1], [0], [0], [0, 0, 1, 0], [], []>} : vector<16x8xf32>, vector<16x8xf32>, vector<16x16xf32> -> vector<16x16xf32>
    %37 = arith.addf %36, %25 : vector<16x16xf32>
    %cst_22 = arith.constant dense<0xFF800000> : vector<16xf32>
    %38 = vector.multi_reduction <maximumf>, %37, %cst_22 [1] : vector<16x16xf32> to vector<16xf32>
    %39 = vector.shape_cast %38 : vector<16xf32> to vector<16x1xf32>
    %40 = vector.broadcast %39 : vector<16x1xf32> to vector<16x16xf32>
    %41 = arith.subf %37, %40 : vector<16x16xf32>
    %42 = math.exp %41 : vector<16x16xf32>
    %cst_23 = arith.constant dense<0.000000e+00> : vector<16xf32>
    %43 = vector.multi_reduction <add>, %42, %cst_23 [1] : vector<16x16xf32> to vector<16xf32>
    %44 = vector.shape_cast %43 : vector<16xf32> to vector<16x1xf32>
    %45 = vector.broadcast %44 : vector<16x1xf32> to vector<16x16xf32>
    %46 = arith.divf %42, %45 : vector<16x16xf32>
    %47 = vector.extract_strided_slice %29 {offsets = [0, 0], sizes = [16, 32], strides = [1, 1]} : vector<16x128xf32> to vector<16x32xf32>
    %cst_24 = arith.constant dense<0.000000e+00> : vector<16x32xf32>
    %48 = tpu.matmul %46, %47, %cst_24 {dimension_numbers = #tpu.dot_dimension_numbers<[1], [0], [0], [1], [0, 0, 1, 1], [], []>} : vector<16x16xf32>, vector<16x32xf32>, vector<16x32xf32> -> vector<16x32xf32>
    %49 = vector.extract_strided_slice %33 {offsets = [0, 8], sizes = [16, 8], strides = [1, 1]} : vector<16x32xf32> to vector<16x8xf32>
    %50 = vector.extract_strided_slice %31 {offsets = [0, 8], sizes = [16, 8], strides = [1, 1]} : vector<16x32xf32> to vector<16x8xf32>
    %cst_25 = arith.constant dense<0.000000e+00> : vector<16x16xf32>
    %51 = tpu.matmul %49, %50, %cst_25 {dimension_numbers = #tpu.dot_dimension_numbers<[1], [1], [0], [0], [0, 0, 1, 0], [], []>} : vector<16x8xf32>, vector<16x8xf32>, vector<16x16xf32> -> vector<16x16xf32>
    %52 = arith.addf %51, %25 : vector<16x16xf32>
    %cst_26 = arith.constant dense<0xFF800000> : vector<16xf32>
    %53 = vector.multi_reduction <maximumf>, %52, %cst_26 [1] : vector<16x16xf32> to vector<16xf32>
    %54 = vector.shape_cast %53 : vector<16xf32> to vector<16x1xf32>
    %55 = vector.broadcast %54 : vector<16x1xf32> to vector<16x16xf32>
    %56 = arith.subf %52, %55 : vector<16x16xf32>
    %57 = math.exp %56 : vector<16x16xf32>
    %cst_27 = arith.constant dense<0.000000e+00> : vector<16xf32>
    %58 = vector.multi_reduction <add>, %57, %cst_27 [1] : vector<16x16xf32> to vector<16xf32>
    %59 = vector.shape_cast %58 : vector<16xf32> to vector<16x1xf32>
    %60 = vector.broadcast %59 : vector<16x1xf32> to vector<16x16xf32>
    %61 = arith.divf %57, %60 : vector<16x16xf32>
    %62 = vector.extract_strided_slice %29 {offsets = [0, 32], sizes = [16, 32], strides = [1, 1]} : vector<16x128xf32> to vector<16x32xf32>
    %cst_28 = arith.constant dense<0.000000e+00> : vector<16x32xf32>
    %63 = tpu.matmul %61, %62, %cst_28 {dimension_numbers = #tpu.dot_dimension_numbers<[1], [0], [0], [1], [0, 0, 1, 1], [], []>} : vector<16x16xf32>, vector<16x32xf32>, vector<16x32xf32> -> vector<16x32xf32>
    %64 = arith.addf %48, %63 : vector<16x32xf32>
    %65 = vector.extract_strided_slice %33 {offsets = [0, 16], sizes = [16, 8], strides = [1, 1]} : vector<16x32xf32> to vector<16x8xf32>
    %66 = vector.extract_strided_slice %31 {offsets = [0, 16], sizes = [16, 8], strides = [1, 1]} : vector<16x32xf32> to vector<16x8xf32>
    %cst_29 = arith.constant dense<0.000000e+00> : vector<16x16xf32>
    %67 = tpu.matmul %65, %66, %cst_29 {dimension_numbers = #tpu.dot_dimension_numbers<[1], [1], [0], [0], [0, 0, 1, 0], [], []>} : vector<16x8xf32>, vector<16x8xf32>, vector<16x16xf32> -> vector<16x16xf32>
    %68 = arith.addf %67, %25 : vector<16x16xf32>
    %cst_30 = arith.constant dense<0xFF800000> : vector<16xf32>
    %69 = vector.multi_reduction <maximumf>, %68, %cst_30 [1] : vector<16x16xf32> to vector<16xf32>
    %70 = vector.shape_cast %69 : vector<16xf32> to vector<16x1xf32>
    %71 = vector.broadcast %70 : vector<16x1xf32> to vector<16x16xf32>
    %72 = arith.subf %68, %71 : vector<16x16xf32>
    %73 = math.exp %72 : vector<16x16xf32>
    %cst_31 = arith.constant dense<0.000000e+00> : vector<16xf32>
    %74 = vector.multi_reduction <add>, %73, %cst_31 [1] : vector<16x16xf32> to vector<16xf32>
    %75 = vector.shape_cast %74 : vector<16xf32> to vector<16x1xf32>
    %76 = vector.broadcast %75 : vector<16x1xf32> to vector<16x16xf32>
    %77 = arith.divf %73, %76 : vector<16x16xf32>
    %78 = vector.extract_strided_slice %29 {offsets = [0, 64], sizes = [16, 32], strides = [1, 1]} : vector<16x128xf32> to vector<16x32xf32>
    %cst_32 = arith.constant dense<0.000000e+00> : vector<16x32xf32>
    %79 = tpu.matmul %77, %78, %cst_32 {dimension_numbers = #tpu.dot_dimension_numbers<[1], [0], [0], [1], [0, 0, 1, 1], [], []>} : vector<16x16xf32>, vector<16x32xf32>, vector<16x32xf32> -> vector<16x32xf32>
    %80 = arith.addf %64, %79 : vector<16x32xf32>
    %81 = vector.extract_strided_slice %33 {offsets = [0, 24], sizes = [16, 8], strides = [1, 1]} : vector<16x32xf32> to vector<16x8xf32>
    %82 = vector.extract_strided_slice %31 {offsets = [0, 24], sizes = [16, 8], strides = [1, 1]} : vector<16x32xf32> to vector<16x8xf32>
    %cst_33 = arith.constant dense<0.000000e+00> : vector<16x16xf32>
    %83 = tpu.matmul %81, %82, %cst_33 {dimension_numbers = #tpu.dot_dimension_numbers<[1], [1], [0], [0], [0, 0, 1, 0], [], []>} : vector<16x8xf32>, vector<16x8xf32>, vector<16x16xf32> -> vector<16x16xf32>
    %84 = arith.addf %83, %25 : vector<16x16xf32>
    %cst_34 = arith.constant dense<0xFF800000> : vector<16xf32>
    %85 = vector.multi_reduction <maximumf>, %84, %cst_34 [1] : vector<16x16xf32> to vector<16xf32>
    %86 = vector.shape_cast %85 : vector<16xf32> to vector<16x1xf32>
    %87 = vector.broadcast %86 : vector<16x1xf32> to vector<16x16xf32>
    %88 = arith.subf %84, %87 : vector<16x16xf32>
    %89 = math.exp %88 : vector<16x16xf32>
    %cst_35 = arith.constant dense<0.000000e+00> : vector<16xf32>
    %90 = vector.multi_reduction <add>, %89, %cst_35 [1] : vector<16x16xf32> to vector<16xf32>
    %91 = vector.shape_cast %90 : vector<16xf32> to vector<16x1xf32>
    %92 = vector.broadcast %91 : vector<16x1xf32> to vector<16x16xf32>
    %93 = arith.divf %89, %92 : vector<16x16xf32>
    %94 = vector.extract_strided_slice %29 {offsets = [0, 96], sizes = [16, 32], strides = [1, 1]} : vector<16x128xf32> to vector<16x32xf32>
    %cst_36 = arith.constant dense<0.000000e+00> : vector<16x32xf32>
    %95 = tpu.matmul %93, %94, %cst_36 {dimension_numbers = #tpu.dot_dimension_numbers<[1], [0], [0], [1], [0, 0, 1, 1], [], []>} : vector<16x16xf32>, vector<16x32xf32>, vector<16x32xf32> -> vector<16x32xf32>
    %96 = arith.addf %80, %95 : vector<16x32xf32>
    %97 = vector.broadcast %10 : vector<1x32xf32> to vector<16x32xf32>
    %98 = arith.addf %96, %97 : vector<16x32xf32>
    %99 = arith.addf %14, %98 : vector<16x32xf32>
    %cst_37 = arith.constant dense<0.000000e+00> : vector<16x32xf32>
    %100 = tpu.matmul %99, %3, %cst_37 {dimension_numbers = #tpu.dot_dimension_numbers<[1], [0], [0], [1], [0, 0, 1, 1], [], []>} : vector<16x32xf32>, vector<32x32xf32>, vector<16x32xf32> -> vector<16x32xf32>
    %101 = vector.broadcast %8 : vector<1x32xf32> to vector<16x32xf32>
    %102 = arith.addf %100, %101 : vector<16x32xf32>
    %cst_38 = arith.constant dense<0.000000e+00> : vector<16x32xf32>
    %103 = tpu.matmul %15, %4, %cst_38 {dimension_numbers = #tpu.dot_dimension_numbers<[1], [0], [0], [1], [0, 0, 1, 1], [], []>} : vector<16x32xf32>, vector<32x32xf32>, vector<16x32xf32> -> vector<16x32xf32>
    %104 = vector.broadcast %9 : vector<1x32xf32> to vector<16x32xf32>
    %105 = arith.addf %103, %104 : vector<16x32xf32>
    %cst_39 = arith.constant dense<0.000000e+00> : vector<16x128xf32>
    %106 = tpu.matmul %15, %1, %cst_39 {dimension_numbers = #tpu.dot_dimension_numbers<[1], [0], [0], [1], [0, 0, 1, 1], [], []>} : vector<16x32xf32>, vector<32x128xf32>, vector<16x128xf32> -> vector<16x128xf32>
    %cst_40 = arith.constant 0.353553385 : f32
    %107 = vector.broadcast %cst_40 : f32 to vector<16x32xf32>
    %108 = arith.mulf %102, %107 : vector<16x32xf32>
    %109 = vector.extract_strided_slice %108 {offsets = [0, 0], sizes = [16, 8], strides = [1, 1]} : vector<16x32xf32> to vector<16x8xf32>
    %110 = vector.extract_strided_slice %105 {offsets = [0, 0], sizes = [16, 8], strides = [1, 1]} : vector<16x32xf32> to vector<16x8xf32>
    %cst_41 = arith.constant dense<0.000000e+00> : vector<16x16xf32>
    %111 = tpu.matmul %109, %110, %cst_41 {dimension_numbers = #tpu.dot_dimension_numbers<[1], [1], [0], [0], [0, 0, 1, 0], [], []>} : vector<16x8xf32>, vector<16x8xf32>, vector<16x16xf32> -> vector<16x16xf32>
    %112 = arith.addf %111, %25 : vector<16x16xf32>
    %cst_42 = arith.constant dense<0xFF800000> : vector<16xf32>
    %113 = vector.multi_reduction <maximumf>, %112, %cst_42 [1] : vector<16x16xf32> to vector<16xf32>
    %114 = vector.shape_cast %113 : vector<16xf32> to vector<16x1xf32>
    %115 = vector.broadcast %114 : vector<16x1xf32> to vector<16x16xf32>
    %116 = arith.subf %112, %115 : vector<16x16xf32>
    %117 = math.exp %116 : vector<16x16xf32>
    %cst_43 = arith.constant dense<0.000000e+00> : vector<16xf32>
    %118 = vector.multi_reduction <add>, %117, %cst_43 [1] : vector<16x16xf32> to vector<16xf32>
    %119 = vector.shape_cast %118 : vector<16xf32> to vector<16x1xf32>
    %120 = vector.broadcast %119 : vector<16x1xf32> to vector<16x16xf32>
    %121 = arith.divf %117, %120 : vector<16x16xf32>
    %122 = vector.extract_strided_slice %106 {offsets = [0, 0], sizes = [16, 32], strides = [1, 1]} : vector<16x128xf32> to vector<16x32xf32>
    %cst_44 = arith.constant dense<0.000000e+00> : vector<16x32xf32>
    %123 = tpu.matmul %121, %122, %cst_44 {dimension_numbers = #tpu.dot_dimension_numbers<[1], [0], [0], [1], [0, 0, 1, 1], [], []>} : vector<16x16xf32>, vector<16x32xf32>, vector<16x32xf32> -> vector<16x32xf32>
    %124 = vector.extract_strided_slice %108 {offsets = [0, 8], sizes = [16, 8], strides = [1, 1]} : vector<16x32xf32> to vector<16x8xf32>
    %125 = vector.extract_strided_slice %105 {offsets = [0, 8], sizes = [16, 8], strides = [1, 1]} : vector<16x32xf32> to vector<16x8xf32>
    %cst_45 = arith.constant dense<0.000000e+00> : vector<16x16xf32>
    %126 = tpu.matmul %124, %125, %cst_45 {dimension_numbers = #tpu.dot_dimension_numbers<[1], [1], [0], [0], [0, 0, 1, 0], [], []>} : vector<16x8xf32>, vector<16x8xf32>, vector<16x16xf32> -> vector<16x16xf32>
    %127 = arith.addf %126, %25 : vector<16x16xf32>
    %cst_46 = arith.constant dense<0xFF800000> : vector<16xf32>
    %128 = vector.multi_reduction <maximumf>, %127, %cst_46 [1] : vector<16x16xf32> to vector<16xf32>
    %129 = vector.shape_cast %128 : vector<16xf32> to vector<16x1xf32>
    %130 = vector.broadcast %129 : vector<16x1xf32> to vector<16x16xf32>
    %131 = arith.subf %127, %130 : vector<16x16xf32>
    %132 = math.exp %131 : vector<16x16xf32>
    %cst_47 = arith.constant dense<0.000000e+00> : vector<16xf32>
    %133 = vector.multi_reduction <add>, %132, %cst_47 [1] : vector<16x16xf32> to vector<16xf32>
    %134 = vector.shape_cast %133 : vector<16xf32> to vector<16x1xf32>
    %135 = vector.broadcast %134 : vector<16x1xf32> to vector<16x16xf32>
    %136 = arith.divf %132, %135 : vector<16x16xf32>
    %137 = vector.extract_strided_slice %106 {offsets = [0, 32], sizes = [16, 32], strides = [1, 1]} : vector<16x128xf32> to vector<16x32xf32>
    %cst_48 = arith.constant dense<0.000000e+00> : vector<16x32xf32>
    %138 = tpu.matmul %136, %137, %cst_48 {dimension_numbers = #tpu.dot_dimension_numbers<[1], [0], [0], [1], [0, 0, 1, 1], [], []>} : vector<16x16xf32>, vector<16x32xf32>, vector<16x32xf32> -> vector<16x32xf32>
    %139 = arith.addf %123, %138 : vector<16x32xf32>
    %140 = vector.extract_strided_slice %108 {offsets = [0, 16], sizes = [16, 8], strides = [1, 1]} : vector<16x32xf32> to vector<16x8xf32>
    %141 = vector.extract_strided_slice %105 {offsets = [0, 16], sizes = [16, 8], strides = [1, 1]} : vector<16x32xf32> to vector<16x8xf32>
    %cst_49 = arith.constant dense<0.000000e+00> : vector<16x16xf32>
    %142 = tpu.matmul %140, %141, %cst_49 {dimension_numbers = #tpu.dot_dimension_numbers<[1], [1], [0], [0], [0, 0, 1, 0], [], []>} : vector<16x8xf32>, vector<16x8xf32>, vector<16x16xf32> -> vector<16x16xf32>
    %143 = arith.addf %142, %25 : vector<16x16xf32>
    %cst_50 = arith.constant dense<0xFF800000> : vector<16xf32>
    %144 = vector.multi_reduction <maximumf>, %143, %cst_50 [1] : vector<16x16xf32> to vector<16xf32>
    %145 = vector.shape_cast %144 : vector<16xf32> to vector<16x1xf32>
    %146 = vector.broadcast %145 : vector<16x1xf32> to vector<16x16xf32>
    %147 = arith.subf %143, %146 : vector<16x16xf32>
    %148 = math.exp %147 : vector<16x16xf32>
    %cst_51 = arith.constant dense<0.000000e+00> : vector<16xf32>
    %149 = vector.multi_reduction <add>, %148, %cst_51 [1] : vector<16x16xf32> to vector<16xf32>
    %150 = vector.shape_cast %149 : vector<16xf32> to vector<16x1xf32>
    %151 = vector.broadcast %150 : vector<16x1xf32> to vector<16x16xf32>
    %152 = arith.divf %148, %151 : vector<16x16xf32>
    %153 = vector.extract_strided_slice %106 {offsets = [0, 64], sizes = [16, 32], strides = [1, 1]} : vector<16x128xf32> to vector<16x32xf32>
    %cst_52 = arith.constant dense<0.000000e+00> : vector<16x32xf32>
    %154 = tpu.matmul %152, %153, %cst_52 {dimension_numbers = #tpu.dot_dimension_numbers<[1], [0], [0], [1], [0, 0, 1, 1], [], []>} : vector<16x16xf32>, vector<16x32xf32>, vector<16x32xf32> -> vector<16x32xf32>
    %155 = arith.addf %139, %154 : vector<16x32xf32>
    %156 = vector.extract_strided_slice %108 {offsets = [0, 24], sizes = [16, 8], strides = [1, 1]} : vector<16x32xf32> to vector<16x8xf32>
    %157 = vector.extract_strided_slice %105 {offsets = [0, 24], sizes = [16, 8], strides = [1, 1]} : vector<16x32xf32> to vector<16x8xf32>
    %cst_53 = arith.constant dense<0.000000e+00> : vector<16x16xf32>
    %158 = tpu.matmul %156, %157, %cst_53 {dimension_numbers = #tpu.dot_dimension_numbers<[1], [1], [0], [0], [0, 0, 1, 0], [], []>} : vector<16x8xf32>, vector<16x8xf32>, vector<16x16xf32> -> vector<16x16xf32>
    %159 = arith.addf %158, %25 : vector<16x16xf32>
    %cst_54 = arith.constant dense<0xFF800000> : vector<16xf32>
    %160 = vector.multi_reduction <maximumf>, %159, %cst_54 [1] : vector<16x16xf32> to vector<16xf32>
    %161 = vector.shape_cast %160 : vector<16xf32> to vector<16x1xf32>
    %162 = vector.broadcast %161 : vector<16x1xf32> to vector<16x16xf32>
    %163 = arith.subf %159, %162 : vector<16x16xf32>
    %164 = math.exp %163 : vector<16x16xf32>
    %cst_55 = arith.constant dense<0.000000e+00> : vector<16xf32>
    %165 = vector.multi_reduction <add>, %164, %cst_55 [1] : vector<16x16xf32> to vector<16xf32>
    %166 = vector.shape_cast %165 : vector<16xf32> to vector<16x1xf32>
    %167 = vector.broadcast %166 : vector<16x1xf32> to vector<16x16xf32>
    %168 = arith.divf %164, %167 : vector<16x16xf32>
    %169 = vector.extract_strided_slice %106 {offsets = [0, 96], sizes = [16, 32], strides = [1, 1]} : vector<16x128xf32> to vector<16x32xf32>
    %cst_56 = arith.constant dense<0.000000e+00> : vector<16x32xf32>
    %170 = tpu.matmul %168, %169, %cst_56 {dimension_numbers = #tpu.dot_dimension_numbers<[1], [0], [0], [1], [0, 0, 1, 1], [], []>} : vector<16x16xf32>, vector<16x32xf32>, vector<16x32xf32> -> vector<16x32xf32>
    %171 = arith.addf %155, %170 : vector<16x32xf32>
    %172 = vector.broadcast %11 : vector<1x32xf32> to vector<16x32xf32>
    %173 = arith.addf %171, %172 : vector<16x32xf32>
    %174 = arith.addf %99, %173 : vector<16x32xf32>
    %cst_57 = arith.constant dense<0.000000e+00> : vector<16x32xf32>
    %175 = tpu.matmul %174, %5, %cst_57 {dimension_numbers = #tpu.dot_dimension_numbers<[1], [0], [0], [1], [0, 0, 1, 1], [], []>} : vector<16x32xf32>, vector<32x32xf32>, vector<16x32xf32> -> vector<16x32xf32>
    %176 = vector.broadcast %12 : vector<1x32xf32> to vector<16x32xf32>
    %177 = arith.addf %175, %176 : vector<16x32xf32>
    %cst_58 = arith.constant dense<0.000000e+00> : vector<16x32xf32>
    %178 = tpu.matmul %177, %6, %cst_58 {dimension_numbers = #tpu.dot_dimension_numbers<[1], [0], [0], [1], [0, 0, 1, 1], [], []>} : vector<16x32xf32>, vector<32x32xf32>, vector<16x32xf32> -> vector<16x32xf32>
    %179 = vector.broadcast %13 : vector<1x32xf32> to vector<16x32xf32>
    %180 = arith.addf %178, %179 : vector<16x32xf32>
    %181 = arith.addf %174, %180 : vector<16x32xf32>
    %c0_59 = arith.constant 0 : index
    %c0_60 = arith.constant 0 : index
    %182 = vector.load %arg3[%c0_59, %c0_60] : memref<16x32xf32, #tpu.memory_space<vmem>>, vector<16x32xf32>
    tpu.vector_store %arg3[%c0_59, %c0_60], %181 {strides = array<i32>} : memref<16x32xf32, #tpu.memory_space<vmem>>, vector<16x32xf32>,
    return
  }
  func.func @transform_0(%arg0: i32) -> (i32, i32) {
    %c0_i32 = arith.constant 0 : i32
    %c0_i32_0 = arith.constant 0 : i32
    %c0_i32_1 = arith.constant 0 : i32
    return %c0_i32, %c0_i32_0 : i32, i32
  }
  func.func @transform_1(%arg0: i32) -> (i32, i32) {
    %c0_i32 = arith.constant 0 : i32
    %c0_i32_0 = arith.constant 0 : i32
    %c0_i32_1 = arith.constant 0 : i32
    return %c0_i32, %c0_i32_0 : i32, i32
  }
  func.func @transform_2(%arg0: i32) -> (i32, i32) {
    %c0_i32 = arith.constant 0 : i32
    %c0_i32_0 = arith.constant 0 : i32
    %c0_i32_1 = arith.constant 0 : i32
    return %c0_i32, %c0_i32_0 : i32, i32
  }
}

</mosaic_0001>

<llo_original>
// kernel: transformer_decoder_layer.1
$region0: #{transformer_decoder_layer.1}
  #allocation0 [shape = 'u32[]', space=smem, size = 0x4, offset = 0x4, fixed_abs, tag = 'smem constant byte address 0x4 - core index']
  #allocation1 [shape = 'u32[144,128]{1,0:T(1,128)}', space=vmem, size = 0x12000, scoped, tag = 'internal scratch']
  %s0 = inlined_call_operand.vmem [shape: f32[32,32], index: 0, kind: input, shape index: {}]
  %s1 = inlined_call_operand.hbm [shape: f32[232,128], index: 1, kind: input, shape index: {}]
  %s2 = inlined_call_operand.hbm [shape: f32[16,32], index: 2, kind: output, shape index: {}]
  %s3 = sld [smem:[#allocation0]]
  $region22: #{transformer_decoder_layer.1} parent=0
    _
  %s5 = ssub.s32 1, %s3
  %s6 = scalar_select 0, %s5, %s3
  $region1: #{transformer_decoder_layer.1} parent=0
    #allocation2 [shape = 'u8[118784]{0}', space=vmem, size = 0x1d000, scoped, tag = 'input window, operand 1, single buffered']
    #allocation3 [shape = 's32[1]{0}', space=sflag, size = 0x4, scoped, tag = 'scoped memory for transformer_decoder_layer.1']
    #allocation4 [shape = 's32[1]{0}', space=sflag, size = 0x4, scoped, tag = 'scoped memory for transformer_decoder_layer.1']
    #allocation5 [shape = 'u8[8192]{0}', space=vmem, size = 0x2000, scoped, tag = 'output window, operand 0, single buffered']
    %7 = vsyncpa [#allocation3], 0
    %8 = vsyncpa [#allocation4], 0
    // Predicated region
    $region2: #{transformer_decoder_layer.1} parent=1 // pred_check
      _
    $region3: #{transformer_decoder_layer.1} parent=1 // pred_check_branch
      %10 = sbr.rel (0) target = $region5
    $region4: #{transformer_decoder_layer.1} parent=1 // pred_region
      _
    $region5: #{transformer_decoder_layer.1} parent=1 // pred_fallthru
      _
    // Predicated region
    $region6: #{transformer_decoder_layer.1} parent=1 // pred_check
      _
    $region7: #{transformer_decoder_layer.1} parent=1 // pred_check_branch
      %12 = sbr.rel (0) target = $region9
    $region8: #{transformer_decoder_layer.1} parent=1 // pred_region
      %s14 = ssub.s32 3712, 3712
      %15 = vsyncadd [#allocation3], %s14
      %s16 = sshll.u32 [#allocation2], 4
      %s17 = int_to_ptr.vmem [resolvable:$true] %s16
      %22 = dma.hbm_to_vmem [thread:$0]  %s1, 3712, %s17, [#allocation3], 128, 128, 8
    $region9: #{transformer_decoder_layer.1} parent=1 // pred_fallthru
      _
    // Predicated region
    $region10: #{transformer_decoder_layer.1} parent=1 // pred_check
      _
    $region11: #{transformer_decoder_layer.1} parent=1 // pred_check_branch
      %24 = sbr.rel (0) target = $region13
    $region12: #{transformer_decoder_layer.1} parent=1 // pred_region
      %25 = dma.done [#allocation3], 3712
    $region13: #{transformer_decoder_layer.1} parent=1 // pred_fallthru
      _
    %v26 = vld [vmem:[#allocation2] sm:$0xff]
    %v27 = vld [vmem:[#allocation2 + $0x8] sm:$0xff]
    %v28 = vld [vmem:[#allocation2 + $0x10] sm:$0xff]
    %v29 = vld [vmem:[#allocation2 + $0x18] sm:$0xff]
    %v30 = vld [vmem:[#allocation2 + $0x20] sm:$0xff]
    %v31 = vld [vmem:[#allocation2 + $0x28] sm:$0xff]
    %v32 = vld [vmem:[#allocation2 + $0x30] sm:$0xff]
    %v33 = vld [vmem:[#allocation2 + $0x38] sm:$0xff]
    %v34 = vld [vmem:[#allocation2 + $0x40] sm:$0xff]
    %v35 = vld [vmem:[#allocation2 + $0x48] sm:$0xff]
    %v36 = vld [vmem:[#allocation2 + $0x50] sm:$0xff]
    %v37 = vld [vmem:[#allocation2 + $0x58] sm:$0xff]
    %v38 = vld [vmem:[#allocation2 + $0x60] sm:$0xff]
    %v39 = vld [vmem:[#allocation2 + $0x68] sm:$0xff]
    %v40 = vld [vmem:[#allocation2 + $0x70] sm:$0xff]
    %v41 = vld [vmem:[#allocation2 + $0x78] sm:$0xff]
    %v42 = vld [vmem:[#allocation2 + $0x80] sm:$0xff]
    %v43 = vld [vmem:[#allocation2 + $0x88] sm:$0xff]
    %v44 = vld [vmem:[#allocation2 + $0x90] sm:$0xff]
    %v45 = vld [vmem:[#allocation2 + $0x98] sm:$0xff]
    %v46 = vld [vmem:[#allocation2 + $0xa0] sm:$0xff]
    %v47 = vld [vmem:[#allocation2 + $0xa8] sm:$0xff]
    %v48 = vld [vmem:[#allocation2 + $0xb0] sm:$0xff]
    %v49 = vld [vmem:[#allocation2 + $0xb8] sm:$0xff]
    %v50 = vld [vmem:[#allocation2 + $0xc0] sm:$0xff]
    %v51 = vld [vmem:[#allocation2 + $0xc8] sm:$0xff]
    %v52 = vld [vmem:[#allocation2 + $0xd0] sm:$0xff]
    %v53 = vld [vmem:[#allocation2 + $0xd8] sm:$0xff]
    %v54 = vld [vmem:[#allocation2 + $0xe0] sm:$0x1]
    %v55 = vld [vmem:[#allocation2 + $0xe1] sm:$0x1]
    %v56 = vld [vmem:[#allocation2 + $0xe2] sm:$0x1]
    %v57 = vld [vmem:[#allocation2 + $0xe3] sm:$0x1]
    %v58 = vld [vmem:[#allocation2 + $0xe4] sm:$0x1]
    %v59 = vld [vmem:[#allocation2 + $0xe5] sm:$0x1]
    %v60 = vld [vmem:[#allocation2 + $0xe6] sm:$0x1]
    %v61 = vld [vmem:[%s0] sm:$0xff]
    %v62 = vld [vmem:[%s0 + $0x8] sm:$0xff]
    %v63 = vld [vmem:[%s0 + $0x10] sm:$0xff]
    %v64 = vld [vmem:[%s0 + $0x18] sm:$0xff]
    %v65 = vlaneseq
    %v66 = vshrl.u32 %v65, 7
    %v67 = vadd.s32 %v66, 8
    %v68 = vlaneseq
    %v69 = vand.u32 %v68, 127
    %v70 = vxor.u32 %v66, %v69
    %v71 = vxor.u32 %v67, %v69
    %v72 = vand.u32 %v70, 1
    %v73 = vand.u32 %v71, 1
    %vm74 = vcmp.eq.s32.totalorder %v72, 0
    %vm75 = vcmp.eq.s32.totalorder %v73, 0
    %v76 = vsel %vm74, 0.0, -1.7014117e+38
    %v77 = vsel %vm75, 0.0, -1.7014117e+38
    %v78 = vlaneseq
    %v79 = vshrl.u32 %v78, 7
    %v80 = vsub.s32 0, %v79
    %v81 = vrot.slane %v54, %v80
    %vm82 = vcmask 261120
    %v84 = vsel %vm82, %v61, 0
    %v87 = vsel %vm82, %v62, 0
    %89 = vmatprep.subr.mxu0 0.0
    %90 = vmatpush1.msra.mxu0 0.0
    %91 = vmatprep.subr.mxu0 0.0
    %92 = vmatpush1.msra.mxu0 0.0
    %93 = vmatprep.subr.mxu0 0.0
    %94 = vmatpush1.msra.mxu0 0.0
    %95 = vmatprep.subr.mxu0 0.0
    %96 = vmatpush1.msra.mxu0 0.0
    %97 = vmatprep.subr.mxu0 0.0
    %98 = vmatpush1.msra.mxu0 0.0
    %99 = vmatprep.subr.mxu0 0.0
    %100 = vmatpush1.msra.mxu0 0.0
    %101 = vmatprep.subr.mxu0 0.0
    %102 = vmatpush1.msra.mxu0 0.0
    %103 = vmatprep.subr.mxu0 0.0
    %104 = vmatpush1.msra.mxu0 0.0
    %105 = vmatprep.subr.mxu0 0.0
    %106 = vmatpush1.msra.mxu0 0.0
    %107 = vmatprep.subr.mxu0 0.0
    %108 = vmatpush1.msra.mxu0 0.0
    %109 = vmatprep.subr.mxu0 0.0
    %110 = vmatpush1.msra.mxu0 0.0
    %111 = vmatprep.subr.mxu0 0.0
    %112 = vmatpush1.msra.mxu0 0.0
    %113 = vmatprep.subr.mxu0 0.0
    %114 = vmatpush1.msra.mxu0 %v37
    %115 = vmatprep.subr.mxu0 0.0
    %116 = vmatpush1.msra.mxu0 %v36
    %117 = vmatprep.subr.mxu0 0.0
    %118 = vmatpush1.msra.mxu0 %v35
    %119 = vmatprep.subr.mxu0 0.0
    %120 = vmatpush1.msra.mxu0 %v34
    %121 = vmatprep.subr.mxu0 0.0
    %122 = vmatpush2.msra.mxu0 0.0
    %123 = vmatprep.subr.mxu0 0.0
    %124 = vmatpush2.msra.mxu0 0.0
    %125 = vmatprep.subr.mxu0 0.0
    %126 = vmatpush2.msra.mxu0 0.0
    %127 = vmatprep.subr.mxu0 0.0
    %128 = vmatpush2.msra.mxu0 0.0
    %129 = vmatprep.subr.mxu0 0.0
    %130 = vmatpush2.msra.mxu0 0.0
    %131 = vmatprep.subr.mxu0 0.0
    %132 = vmatpush2.msra.mxu0 0.0
    %133 = vmatprep.subr.mxu0 0.0
    %134 = vmatpush2.msra.mxu0 0.0
    %135 = vmatprep.subr.mxu0 0.0
    %136 = vmatpush2.msra.mxu0 0.0
    %137 = vmatprep.subr.mxu0 0.0
    %138 = vmatpush2.msra.mxu0 0.0
    %139 = vmatprep.subr.mxu0 0.0
    %140 = vmatpush2.msra.mxu0 0.0
    %141 = vmatprep.subr.mxu0 0.0
    %142 = vmatpush2.msra.mxu0 0.0
    %143 = vmatprep.subr.mxu0 0.0
    %144 = vmatpush2.msra.mxu0 0.0
    %145 = vmatprep.subr.mxu0 0.0
    %146 = vmatpush2.msra.mxu0 0.0
    %147 = vmatprep.subr.mxu0 0.0
    %148 = vmatpush2.msra.mxu0 0.0
    %149 = vmatprep.subr.mxu0 0.0
    %150 = vmatpush2.msra.mxu0 0.0
    %151 = vmatprep.subr.mxu0 0.0
    %152 = vmatpush2.msra.mxu0 0.0
    %153 = vmatprep.mubr.f32.mxu0 0.0
    %154 = vmatmul.mubr.f32.gmra.mxu0 %v84
    %v155 = vpop.f32.mrf.mxu0
    %v156 = vadd.f32 %v81, %v155
    %v157 = vpop.f32.mrf.mxu0
    %158 = vmatprep.mubr.f32.mxu0 0.0
    %159 = vmatmul.mubr.f32.gmra.mxu0 %v87
    %v160 = vpop.f32.mrf.mxu0
    %v161 = vadd.f32 %v81, %v160
    %v162 = vpop.f32.mrf.mxu0
    %163 = vdwg.mxu0
    %164 = vmatprep.subr.mxu0 0.0
    %165 = vmatpush1.msra.mxu0 0.0
    %166 = vmatprep.subr.mxu0 0.0
    %167 = vmatpush1.msra.mxu0 0.0
    %168 = vmatprep.subr.mxu0 0.0
    %169 = vmatpush1.msra.mxu0 0.0
    %170 = vmatprep.subr.mxu0 0.0
    %171 = vmatpush1.msra.mxu0 0.0
    %172 = vmatprep.subr.mxu0 0.0
    %173 = vmatpush1.msra.mxu0 0.0
    %174 = vmatprep.subr.mxu0 0.0
    %175 = vmatpush1.msra.mxu0 0.0
    %176 = vmatprep.subr.mxu0 0.0
    %177 = vmatpush1.msra.mxu0 0.0
    %178 = vmatprep.subr.mxu0 0.0
    %179 = vmatpush1.msra.mxu0 0.0
    %180 = vmatprep.subr.mxu0 0.0
    %181 = vmatpush1.msra.mxu0 0.0
    %182 = vmatprep.subr.mxu0 0.0
    %183 = vmatpush1.msra.mxu0 0.0
    %184 = vmatprep.subr.mxu0 0.0
    %185 = vmatpush1.msra.mxu0 0.0
    %186 = vmatprep.subr.mxu0 0.0
    %187 = vmatpush1.msra.mxu0 0.0
    %188 = vmatprep.subr.mxu0 0.0
    %189 = vmatpush1.msra.mxu0 %v29
    %190 = vmatprep.subr.mxu0 0.0
    %191 = vmatpush1.msra.mxu0 %v28
    %192 = vmatprep.subr.mxu0 0.0
    %193 = vmatpush1.msra.mxu0 %v27
    %194 = vmatprep.subr.mxu0 0.0
    %195 = vmatpush1.msra.mxu0 %v26
    %196 = vmatprep.subr.mxu0 0.0
    %197 = vmatpush2.msra.mxu0 0.0
    %198 = vmatprep.subr.mxu0 0.0
    %199 = vmatpush2.msra.mxu0 0.0
    %200 = vmatprep.subr.mxu0 0.0
    %201 = vmatpush2.msra.mxu0 0.0
    %202 = vmatprep.subr.mxu0 0.0
    %203 = vmatpush2.msra.mxu0 0.0
    %204 = vmatprep.subr.mxu0 0.0
    %205 = vmatpush2.msra.mxu0 0.0
    %206 = vmatprep.subr.mxu0 0.0
    %207 = vmatpush2.msra.mxu0 0.0
    %208 = vmatprep.subr.mxu0 0.0
    %209 = vmatpush2.msra.mxu0 0.0
    %210 = vmatprep.subr.mxu0 0.0
    %211 = vmatpush2.msra.mxu0 0.0
    %212 = vmatprep.subr.mxu0 0.0
    %213 = vmatpush2.msra.mxu0 0.0
    %214 = vmatprep.subr.mxu0 0.0
    %215 = vmatpush2.msra.mxu0 0.0
    %216 = vmatprep.subr.mxu0 0.0
    %217 = vmatpush2.msra.mxu0 0.0
    %218 = vmatprep.subr.mxu0 0.0
    %219 = vmatpush2.msra.mxu0 0.0
    %220 = vmatprep.subr.mxu0 0.0
    %221 = vmatpush2.msra.mxu0 0.0
    %222 = vmatprep.subr.mxu0 0.0
    %223 = vmatpush2.msra.mxu0 0.0
    %224 = vmatprep.subr.mxu0 0.0
    %225 = vmatpush2.msra.mxu0 0.0
    %226 = vmatprep.subr.mxu0 0.0
    %227 = vmatpush2.msra.mxu0 0.0
    %228 = vmatprep.mubr.f32.mxu0 0.0
    %229 = vmatmul.mubr.f32.gmra.mxu0 %v84
    %v230 = vpop.f32.mrf.mxu0
    %v231 = vadd.f32 0.0, %v230
    %v232 = vpop.f32.mrf.mxu0
    %233 = vmatprep.mubr.f32.mxu0 0.0
    %234 = vmatmul.mubr.f32.gmra.mxu0 %v87
    %v235 = vpop.f32.mrf.mxu0
    %v236 = vadd.f32 0.0, %v235
    %v237 = vpop.f32.mrf.mxu0
    %238 = vdwg.mxu0
    %v239 = vmul.f32 %v156, 0.35355338
    %v240 = vmul.f32 %v161, 0.35355338
    %243 = vrot.lane.b32.xlu0 %v156, 96
    %v244 = vpop.permute.xlu0 %243
    %245 = vrot.lane.b32.xlu0 %v161, 96
    %v246 = vpop.permute.xlu0 %245
    %vm247 = vcmask 64512
    %v249 = vsel %vm247, %v239, 0
    %v252 = vsel %vm247, %v240, 0
    %v254 = vsel %vm247, %v244, 0
    %v256 = vsel %vm247, %v246, 0
    %258 = vmatprep.subr.mxu0 0.0
    %259 = vmatpush1.xpose.msra.mxu0 0.0
    %260 = vmatprep.subr.mxu0 0.0
    %261 = vmatpush1.xpose.msra.mxu0 0.0
    %262 = vmatprep.subr.mxu0 0.0
    %263 = vmatpush1.xpose.msra.mxu0 0.0
    %264 = vmatprep.subr.mxu0 0.0
    %265 = vmatpush1.xpose.msra.mxu0 0.0
    %266 = vmatprep.subr.mxu0 0.0
    %267 = vmatpush1.xpose.msra.mxu0 0.0
    %268 = vmatprep.subr.mxu0 0.0
    %269 = vmatpush1.xpose.msra.mxu0 0.0
    %270 = vmatprep.subr.mxu0 0.0
    %271 = vmatpush1.xpose.msra.mxu0 0.0
    %272 = vmatprep.subr.mxu0 0.0
    %273 = vmatpush1.xpose.msra.mxu0 0.0
    %274 = vmatprep.subr.mxu0 0.0
    %275 = vmatpush1.xpose.msra.mxu0 0.0
    %276 = vmatprep.subr.mxu0 0.0
    %277 = vmatpush1.xpose.msra.mxu0 0.0
    %278 = vmatprep.subr.mxu0 0.0
    %279 = vmatpush1.xpose.msra.mxu0 0.0
    %280 = vmatprep.subr.mxu0 0.0
    %281 = vmatpush1.xpose.msra.mxu0 0.0
    %282 = vmatprep.subr.mxu0 0.0
    %283 = vmatpush1.xpose.msra.mxu0 0.0
    %284 = vmatprep.subr.mxu0 0.0
    %285 = vmatpush1.xpose.msra.mxu0 0.0
    %286 = vmatprep.subr.mxu0 0.0
    %287 = vmatpush1.xpose.msra.mxu0 %v256
    %288 = vmatprep.subr.mxu0 0.0
    %289 = vmatpush1.xpose.msra.mxu0 %v254
    %290 = vmatprep.subr.mxu0 0.0
    %291 = vmatpush2.xpose.msra.mxu0 0.0
    %292 = vmatprep.subr.mxu0 0.0
    %293 = vmatpush2.xpose.msra.mxu0 0.0
    %294 = vmatprep.subr.mxu0 0.0
    %295 = vmatpush2.xpose.msra.mxu0 0.0
    %296 = vmatprep.subr.mxu0 0.0
    %297 = vmatpush2.xpose.msra.mxu0 0.0
    %298 = vmatprep.subr.mxu0 0.0
    %299 = vmatpush2.xpose.msra.mxu0 0.0
    %300 = vmatprep.subr.mxu0 0.0
    %301 = vmatpush2.xpose.msra.mxu0 0.0
    %302 = vmatprep.subr.mxu0 0.0
    %303 = vmatpush2.xpose.msra.mxu0 0.0
    %304 = vmatprep.subr.mxu0 0.0
    %305 = vmatpush2.xpose.msra.mxu0 0.0
    %306 = vmatprep.subr.mxu0 0.0
    %307 = vmatpush2.xpose.msra.mxu0 0.0
    %308 = vmatprep.subr.mxu0 0.0
    %309 = vmatpush2.xpose.msra.mxu0 0.0
    %310 = vmatprep.subr.mxu0 0.0
    %311 = vmatpush2.xpose.msra.mxu0 0.0
    %312 = vmatprep.subr.mxu0 0.0
    %313 = vmatpush2.xpose.msra.mxu0 0.0
    %314 = vmatprep.subr.mxu0 0.0
    %315 = vmatpush2.xpose.msra.mxu0 0.0
    %316 = vmatprep.subr.mxu0 0.0
    %317 = vmatpush2.xpose.msra.mxu0 0.0
    %318 = vmatprep.subr.mxu0 0.0
    %319 = vmatpush2.xpose.msra.mxu0 0.0
    %320 = vmatprep.subr.mxu0 0.0
    %321 = vmatpush2.xpose.msra.mxu0 0.0
    %322 = vmatprep.mubr.f32.mxu0 0.0
    %323 = vmatmul.mubr.f32.gmra.mxu0 %v249
    %v324 = vpop.f32.mrf.mxu0
    %v325 = vadd.f32 %v76, %v324
    %v326 = vpop.f32.mrf.mxu0
    %327 = vmatprep.mubr.f32.mxu0 0.0
    %328 = vmatmul.mubr.f32.gmra.mxu0 %v252
    %v329 = vpop.f32.mrf.mxu0
    %v330 = vadd.f32 %v77, %v329
    %v331 = vpop.f32.mrf.mxu0
    %332 = vdwg.mxu0
    %vm333 = vcmask 130048
    %v334 = vsel %vm333, %v325, -inf
    %335 = vmax.xlane.f32.xlu0 %v334
    %v336 = vpop.xlane.xlu0 %335
    %v337 = vsel %vm333, %v330, -inf
    %338 = vmax.xlane.f32.xlu0 %v337
    %v339 = vpop.xlane.xlu0 %338
    %v340 = vsub.f32 %v325, %v336
    %v341 = vsub.f32 %v330, %v339
    %v342 = vmul.f32 %v340, 1.442695
    %v343 = vpow.pop %v342
    %v344 = vmul.f32 %v341, 1.442695
    %v345 = vpow.pop %v344
    %v346 = vsel %vm333, %v343, 0.0
    %347 = vadd.xlane.f32.xlu0 %v346
    %v348 = vpop.xlane.xlu0 %347
    %v349 = vsel %vm333, %v345, 0.0
    %350 = vadd.xlane.f32.xlu0 %v349
    %v351 = vpop.xlane.xlu0 %350
    %v352 = vrcp.pop %v348
    %v353 = vmul.f32 %v343, %v352
    %v354 = vrcp.pop %v351
    %v355 = vmul.f32 %v345, %v354
    %356 = vrot.lane.b32.xlu0 %v239, 120
    %v357 = vpop.permute.xlu0 %356
    %358 = vrot.lane.b32.xlu0 %v240, 120
    %v359 = vpop.permute.xlu0 %358
    %360 = vrot.lane.b32.xlu0 %v156, 88
    %v361 = vpop.permute.xlu0 %360
    %362 = vrot.lane.b32.xlu0 %v161, 88
    %v363 = vpop.permute.xlu0 %362
    %v364 = vsel %vm247, %v357, 0
    %v366 = vsel %vm247, %v359, 0
    %v368 = vsel %vm247, %v361, 0
    %v370 = vsel %vm247, %v363, 0
    %372 = vmatprep.subr.mxu0 0.0
    %373 = vmatpush1.xpose.msra.mxu0 0.0
    %374 = vmatprep.subr.mxu0 0.0
    %375 = vmatpush1.xpose.msra.mxu0 0.0
    %376 = vmatprep.subr.mxu0 0.0
    %377 = vmatpush1.xpose.msra.mxu0 0.0
    %378 = vmatprep.subr.mxu0 0.0
    %379 = vmatpush1.xpose.msra.mxu0 0.0
    %380 = vmatprep.subr.mxu0 0.0
    %381 = vmatpush1.xpose.msra.mxu0 0.0
    %382 = vmatprep.subr.mxu0 0.0
    %383 = vmatpush1.xpose.msra.mxu0 0.0
    %384 = vmatprep.subr.mxu0 0.0
    %385 = vmatpush1.xpose.msra.mxu0 0.0
    %386 = vmatprep.subr.mxu0 0.0
    %387 = vmatpush1.xpose.msra.mxu0 0.0
    %388 = vmatprep.subr.mxu0 0.0
    %389 = vmatpush1.xpose.msra.mxu0 0.0
    %390 = vmatprep.subr.mxu0 0.0
    %391 = vmatpush1.xpose.msra.mxu0 0.0
    %392 = vmatprep.subr.mxu0 0.0
    %393 = vmatpush1.xpose.msra.mxu0 0.0
    %394 = vmatprep.subr.mxu0 0.0
    %395 = vmatpush1.xpose.msra.mxu0 0.0
    %396 = vmatprep.subr.mxu0 0.0
    %397 = vmatpush1.xpose.msra.mxu0 0.0
    %398 = vmatprep.subr.mxu0 0.0
    %399 = vmatpush1.xpose.msra.mxu0 0.0
    %400 = vmatprep.subr.mxu0 0.0
    %401 = vmatpush1.xpose.msra.mxu0 %v370
    %402 = vmatprep.subr.mxu0 0.0
    %403 = vmatpush1.xpose.msra.mxu0 %v368
    %404 = vmatprep.subr.mxu0 0.0
    %405 = vmatpush2.xpose.msra.mxu0 0.0
    %406 = vmatprep.subr.mxu0 0.0
    %407 = vmatpush2.xpose.msra.mxu0 0.0
    %408 = vmatprep.subr.mxu0 0.0
    %409 = vmatpush2.xpose.msra.mxu0 0.0
    %410 = vmatprep.subr.mxu0 0.0
    %411 = vmatpush2.xpose.msra.mxu0 0.0
    %412 = vmatprep.subr.mxu0 0.0
    %413 = vmatpush2.xpose.msra.mxu0 0.0
    %414 = vmatprep.subr.mxu0 0.0
    %415 = vmatpush2.xpose.msra.mxu0 0.0
    %416 = vmatprep.subr.mxu0 0.0
    %417 = vmatpush2.xpose.msra.mxu0 0.0
    %418 = vmatprep.subr.mxu0 0.0
    %419 = vmatpush2.xpose.msra.mxu0 0.0
    %420 = vmatprep.subr.mxu0 0.0
    %421 = vmatpush2.xpose.msra.mxu0 0.0
    %422 = vmatprep.subr.mxu0 0.0
    %423 = vmatpush2.xpose.msra.mxu0 0.0
    %424 = vmatprep.subr.mxu0 0.0
    %425 = vmatpush2.xpose.msra.mxu0 0.0
    %426 = vmatprep.subr.mxu0 0.0
    %427 = vmatpush2.xpose.msra.mxu0 0.0
    %428 = vmatprep.subr.mxu0 0.0
    %429 = vmatpush2.xpose.msra.mxu0 0.0
    %430 = vmatprep.subr.mxu0 0.0
    %431 = vmatpush2.xpose.msra.mxu0 0.0
    %432 = vmatprep.subr.mxu0 0.0
    %433 = vmatpush2.xpose.msra.mxu0 0.0
    %434 = vmatprep.subr.mxu0 0.0
    %435 = vmatpush2.xpose.msra.mxu0 0.0
    %436 = vmatprep.mubr.f32.mxu0 0.0
    %437 = vmatmul.mubr.f32.gmra.mxu0 %v364
    %v438 = vpop.f32.mrf.mxu0
    %v439 = vadd.f32 %v76, %v438
    %v440 = vpop.f32.mrf.mxu0
    %441 = vmatprep.mubr.f32.mxu0 0.0
    %442 = vmatmul.mubr.f32.gmra.mxu0 %v366
    %v443 = vpop.f32.mrf.mxu0
    %v444 = vadd.f32 %v77, %v443
    %v445 = vpop.f32.mrf.mxu0
    %446 = vdwg.mxu0
    %v447 = vsel %vm333, %v439, -inf
    %448 = vmax.xlane.f32.xlu0 %v447
    %v449 = vpop.xlane.xlu0 %448
    %v450 = vsel %vm333, %v444, -inf
    %451 = vmax.xlane.f32.xlu0 %v450
    %v452 = vpop.xlane.xlu0 %451
    %v453 = vsub.f32 %v439, %v449
    %v454 = vsub.f32 %v444, %v452
    %v455 = vmul.f32 %v453, 1.442695
    %v456 = vpow.pop %v455
    %v457 = vmul.f32 %v454, 1.442695
    %v458 = vpow.pop %v457
    %v459 = vsel %vm333, %v456, 0.0
    %460 = vadd.xlane.f32.xlu0 %v459
    %v461 = vpop.xlane.xlu0 %460
    %v462 = vsel %vm333, %v458, 0.0
    %463 = vadd.xlane.f32.xlu0 %v462
    %v464 = vpop.xlane.xlu0 %463
    %v465 = vrcp.pop %v461
    %v466 = vmul.f32 %v456, %v465
    %v467 = vrcp.pop %v464
    %v468 = vmul.f32 %v458, %v467
    %471 = vrot.lane.b32.xlu0 %v231, 96
    %v472 = vpop.permute.xlu0 %471
    %473 = vrot.lane.b32.xlu0 %v236, 96
    %v474 = vpop.permute.xlu0 %473
    %v478 = vsel %vm333, %v466, 0
    %v481 = vsel %vm333, %v468, 0
    %483 = vmatprep.subr.mxu0 0.0
    %484 = vmatpush1.msra.mxu0 0.0
    %485 = vmatprep.subr.mxu0 0.0
    %486 = vmatpush1.msra.mxu0 0.0
    %487 = vmatprep.subr.mxu0 0.0
    %488 = vmatpush1.msra.mxu0 0.0
    %489 = vmatprep.subr.mxu0 0.0
    %490 = vmatpush1.msra.mxu0 0.0
    %491 = vmatprep.subr.mxu0 0.0
    %492 = vmatpush1.msra.mxu0 0.0
    %493 = vmatprep.subr.mxu0 0.0
    %494 = vmatpush1.msra.mxu0 0.0
    %495 = vmatprep.subr.mxu0 0.0
    %496 = vmatpush1.msra.mxu0 0.0
    %497 = vmatprep.subr.mxu0 0.0
    %498 = vmatpush1.msra.mxu0 0.0
    %499 = vmatprep.subr.mxu0 0.0
    %500 = vmatpush1.msra.mxu0 0.0
    %501 = vmatprep.subr.mxu0 0.0
    %502 = vmatpush1.msra.mxu0 0.0
    %503 = vmatprep.subr.mxu0 0.0
    %504 = vmatpush1.msra.mxu0 0.0
    %505 = vmatprep.subr.mxu0 0.0
    %506 = vmatpush1.msra.mxu0 0.0
    %507 = vmatprep.subr.mxu0 0.0
    %508 = vmatpush1.msra.mxu0 0.0
    %509 = vmatprep.subr.mxu0 0.0
    %510 = vmatpush1.msra.mxu0 0.0
    %511 = vmatprep.subr.mxu0 0.0
    %512 = vmatpush1.msra.mxu0 %v474
    %513 = vmatprep.subr.mxu0 0.0
    %514 = vmatpush1.msra.mxu0 %v472
    %515 = vmatprep.subr.mxu0 0.0
    %516 = vmatpush2.msra.mxu0 0.0
    %517 = vmatprep.subr.mxu0 0.0
    %518 = vmatpush2.msra.mxu0 0.0
    %519 = vmatprep.subr.mxu0 0.0
    %520 = vmatpush2.msra.mxu0 0.0
    %521 = vmatprep.subr.mxu0 0.0
    %522 = vmatpush2.msra.mxu0 0.0
    %523 = vmatprep.subr.mxu0 0.0
    %524 = vmatpush2.msra.mxu0 0.0
    %525 = vmatprep.subr.mxu0 0.0
    %526 = vmatpush2.msra.mxu0 0.0
    %527 = vmatprep.subr.mxu0 0.0
    %528 = vmatpush2.msra.mxu0 0.0
    %529 = vmatprep.subr.mxu0 0.0
    %530 = vmatpush2.msra.mxu0 0.0
    %531 = vmatprep.subr.mxu0 0.0
    %532 = vmatpush2.msra.mxu0 0.0
    %533 = vmatprep.subr.mxu0 0.0
    %534 = vmatpush2.msra.mxu0 0.0
    %535 = vmatprep.subr.mxu0 0.0
    %536 = vmatpush2.msra.mxu0 0.0
    %537 = vmatprep.subr.mxu0 0.0
    %538 = vmatpush2.msra.mxu0 0.0
    %539 = vmatprep.subr.mxu0 0.0
    %540 = vmatpush2.msra.mxu0 0.0
    %541 = vmatprep.subr.mxu0 0.0
    %542 = vmatpush2.msra.mxu0 0.0
    %543 = vmatprep.subr.mxu0 0.0
    %544 = vmatpush2.msra.mxu0 0.0
    %545 = vmatprep.subr.mxu0 0.0
    %546 = vmatpush2.msra.mxu0 0.0
    %547 = vmatprep.mubr.f32.mxu0 0.0
    %548 = vmatmul.mubr.f32.gmra.mxu0 %v478
    %v549 = vpop.f32.mrf.mxu0
    %v550 = vadd.f32 0.0, %v549
    %v551 = vpop.f32.mrf.mxu0
    %552 = vmatprep.mubr.f32.mxu0 0.0
    %553 = vmatmul.mubr.f32.gmra.mxu0 %v481
    %v554 = vpop.f32.mrf.mxu0
    %v555 = vadd.f32 0.0, %v554
    %v556 = vpop.f32.mrf.mxu0
    %557 = vdwg.mxu0
    %v559 = vsel %vm333, %v353, 0
    %v562 = vsel %vm333, %v355, 0
    %564 = vmatprep.subr.mxu0 0.0
    %565 = vmatpush1.msra.mxu0 0.0
    %566 = vmatprep.subr.mxu0 0.0
    %567 = vmatpush1.msra.mxu0 0.0
    %568 = vmatprep.subr.mxu0 0.0
    %569 = vmatpush1.msra.mxu0 0.0
    %570 = vmatprep.subr.mxu0 0.0
    %571 = vmatpush1.msra.mxu0 0.0
    %572 = vmatprep.subr.mxu0 0.0
    %573 = vmatpush1.msra.mxu0 0.0
    %574 = vmatprep.subr.mxu0 0.0
    %575 = vmatpush1.msra.mxu0 0.0
    %576 = vmatprep.subr.mxu0 0.0
    %577 = vmatpush1.msra.mxu0 0.0
    %578 = vmatprep.subr.mxu0 0.0
    %579 = vmatpush1.msra.mxu0 0.0
    %580 = vmatprep.subr.mxu0 0.0
    %581 = vmatpush1.msra.mxu0 0.0
    %582 = vmatprep.subr.mxu0 0.0
    %583 = vmatpush1.msra.mxu0 0.0
    %584 = vmatprep.subr.mxu0 0.0
    %585 = vmatpush1.msra.mxu0 0.0
    %586 = vmatprep.subr.mxu0 0.0
    %587 = vmatpush1.msra.mxu0 0.0
    %588 = vmatprep.subr.mxu0 0.0
    %589 = vmatpush1.msra.mxu0 0.0
    %590 = vmatprep.subr.mxu0 0.0
    %591 = vmatpush1.msra.mxu0 0.0
    %592 = vmatprep.subr.mxu0 0.0
    %593 = vmatpush1.msra.mxu0 %v236
    %594 = vmatprep.subr.mxu0 0.0
    %595 = vmatpush1.msra.mxu0 %v231
    %596 = vmatprep.subr.mxu0 0.0
    %597 = vmatpush2.msra.mxu0 0.0
    %598 = vmatprep.subr.mxu0 0.0
    %599 = vmatpush2.msra.mxu0 0.0
    %600 = vmatprep.subr.mxu0 0.0
    %601 = vmatpush2.msra.mxu0 0.0
    %602 = vmatprep.subr.mxu0 0.0
    %603 = vmatpush2.msra.mxu0 0.0
    %604 = vmatprep.subr.mxu0 0.0
    %605 = vmatpush2.msra.mxu0 0.0
    %606 = vmatprep.subr.mxu0 0.0
    %607 = vmatpush2.msra.mxu0 0.0
    %608 = vmatprep.subr.mxu0 0.0
    %609 = vmatpush2.msra.mxu0 0.0
    %610 = vmatprep.subr.mxu0 0.0
    %611 = vmatpush2.msra.mxu0 0.0
    %612 = vmatprep.subr.mxu0 0.0
    %613 = vmatpush2.msra.mxu0 0.0
    %614 = vmatprep.subr.mxu0 0.0
    %615 = vmatpush2.msra.mxu0 0.0
    %616 = vmatprep.subr.mxu0 0.0
    %617 = vmatpush2.msra.mxu0 0.0
    %618 = vmatprep.subr.mxu0 0.0
    %619 = vmatpush2.msra.mxu0 0.0
    %620 = vmatprep.subr.mxu0 0.0
    %621 = vmatpush2.msra.mxu0 0.0
    %622 = vmatprep.subr.mxu0 0.0
    %623 = vmatpush2.msra.mxu0 0.0
    %624 = vmatprep.subr.mxu0 0.0
    %625 = vmatpush2.msra.mxu0 0.0
    %626 = vmatprep.subr.mxu0 0.0
    %627 = vmatpush2.msra.mxu0 0.0
    %628 = vmatprep.mubr.f32.mxu0 0.0
    %629 = vmatmul.mubr.f32.gmra.mxu0 %v559
    %v630 = vpop.f32.mrf.mxu0
    %v631 = vadd.f32 %v550, %v630
    %v632 = vpop.f32.mrf.mxu0
    %633 = vmatprep.mubr.f32.mxu0 0.0
    %634 = vmatmul.mubr.f32.gmra.mxu0 %v562
    %v635 = vpop.f32.mrf.mxu0
    %v636 = vadd.f32 %v555, %v635
    %v637 = vpop.f32.mrf.mxu0
    %638 = vdwg.mxu0
    %639 = vrot.lane.b32.xlu0 %v239, 112
    %v640 = vpop.permute.xlu0 %639
    %641 = vrot.lane.b32.xlu0 %v240, 112
    %v642 = vpop.permute.xlu0 %641
    %643 = vrot.lane.b32.xlu0 %v156, 80
    %v644 = vpop.permute.xlu0 %643
    %645 = vrot.lane.b32.xlu0 %v161, 80
    %v646 = vpop.permute.xlu0 %645
    %v647 = vsel %vm247, %v640, 0
    %v649 = vsel %vm247, %v642, 0
    %v651 = vsel %vm247, %v644, 0
    %v653 = vsel %vm247, %v646, 0
    %655 = vmatprep.subr.mxu0 0.0
    %656 = vmatpush1.xpose.msra.mxu0 0.0
    %657 = vmatprep.subr.mxu0 0.0
    %658 = vmatpush1.xpose.msra.mxu0 0.0
    %659 = vmatprep.subr.mxu0 0.0
    %660 = vmatpush1.xpose.msra.mxu0 0.0
    %661 = vmatprep.subr.mxu0 0.0
    %662 = vmatpush1.xpose.msra.mxu0 0.0
    %663 = vmatprep.subr.mxu0 0.0
    %664 = vmatpush1.xpose.msra.mxu0 0.0
    %665 = vmatprep.subr.mxu0 0.0
    %666 = vmatpush1.xpose.msra.mxu0 0.0
    %667 = vmatprep.subr.mxu0 0.0
    %668 = vmatpush1.xpose.msra.mxu0 0.0
    %669 = vmatprep.subr.mxu0 0.0
    %670 = vmatpush1.xpose.msra.mxu0 0.0
    %671 = vmatprep.subr.mxu0 0.0
    %672 = vmatpush1.xpose.msra.mxu0 0.0
    %673 = vmatprep.subr.mxu0 0.0
    %674 = vmatpush1.xpose.msra.mxu0 0.0
    %675 = vmatprep.subr.mxu0 0.0
    %676 = vmatpush1.xpose.msra.mxu0 0.0
    %677 = vmatprep.subr.mxu0 0.0
    %678 = vmatpush1.xpose.msra.mxu0 0.0
    %679 = vmatprep.subr.mxu0 0.0
    %680 = vmatpush1.xpose.msra.mxu0 0.0
    %681 = vmatprep.subr.mxu0 0.0
    %682 = vmatpush1.xpose.msra.mxu0 0.0
    %683 = vmatprep.subr.mxu0 0.0
    %684 = vmatpush1.xpose.msra.mxu0 %v653
    %685 = vmatprep.subr.mxu0 0.0
    %686 = vmatpush1.xpose.msra.mxu0 %v651
    %687 = vmatprep.subr.mxu0 0.0
    %688 = vmatpush2.xpose.msra.mxu0 0.0
    %689 = vmatprep.subr.mxu0 0.0
    %690 = vmatpush2.xpose.msra.mxu0 0.0
    %691 = vmatprep.subr.mxu0 0.0
    %692 = vmatpush2.xpose.msra.mxu0 0.0
    %693 = vmatprep.subr.mxu0 0.0
    %694 = vmatpush2.xpose.msra.mxu0 0.0
    %695 = vmatprep.subr.mxu0 0.0
    %696 = vmatpush2.xpose.msra.mxu0 0.0
    %697 = vmatprep.subr.mxu0 0.0
    %698 = vmatpush2.xpose.msra.mxu0 0.0
    %699 = vmatprep.subr.mxu0 0.0
    %700 = vmatpush2.xpose.msra.mxu0 0.0
    %701 = vmatprep.subr.mxu0 0.0
    %702 = vmatpush2.xpose.msra.mxu0 0.0
    %703 = vmatprep.subr.mxu0 0.0
    %704 = vmatpush2.xpose.msra.mxu0 0.0
    %705 = vmatprep.subr.mxu0 0.0
    %706 = vmatpush2.xpose.msra.mxu0 0.0
    %707 = vmatprep.subr.mxu0 0.0
    %708 = vmatpush2.xpose.msra.mxu0 0.0
    %709 = vmatprep.subr.mxu0 0.0
    %710 = vmatpush2.xpose.msra.mxu0 0.0
    %711 = vmatprep.subr.mxu0 0.0
    %712 = vmatpush2.xpose.msra.mxu0 0.0
    %713 = vmatprep.subr.mxu0 0.0
    %714 = vmatpush2.xpose.msra.mxu0 0.0
    %715 = vmatprep.subr.mxu0 0.0
    %716 = vmatpush2.xpose.msra.mxu0 0.0
    %717 = vmatprep.subr.mxu0 0.0
    %718 = vmatpush2.xpose.msra.mxu0 0.0
    %719 = vmatprep.mubr.f32.mxu0 0.0
    %720 = vmatmul.mubr.f32.gmra.mxu0 %v647
    %v721 = vpop.f32.mrf.mxu0
    %v722 = vadd.f32 %v76, %v721
    %v723 = vpop.f32.mrf.mxu0
    %724 = vmatprep.mubr.f32.mxu0 0.0
    %725 = vmatmul.mubr.f32.gmra.mxu0 %v649
    %v726 = vpop.f32.mrf.mxu0
    %v727 = vadd.f32 %v77, %v726
    %v728 = vpop.f32.mrf.mxu0
    %729 = vdwg.mxu0
    %v730 = vsel %vm333, %v722, -inf
    %731 = vmax.xlane.f32.xlu0 %v730
    %v732 = vpop.xlane.xlu0 %731
    %v733 = vsel %vm333, %v727, -inf
    %734 = vmax.xlane.f32.xlu0 %v733
    %v735 = vpop.xlane.xlu0 %734
    %v736 = vsub.f32 %v722, %v732
    %v737 = vsub.f32 %v727, %v735
    %v738 = vmul.f32 %v736, 1.442695
    %v739 = vpow.pop %v738
    %v740 = vmul.f32 %v737, 1.442695
    %v741 = vpow.pop %v740
    %v742 = vsel %vm333, %v739, 0.0
    %743 = vadd.xlane.f32.xlu0 %v742
    %v744 = vpop.xlane.xlu0 %743
    %v745 = vsel %vm333, %v741, 0.0
    %746 = vadd.xlane.f32.xlu0 %v745
    %v747 = vpop.xlane.xlu0 %746
    %v748 = vrcp.pop %v744
    %v749 = vmul.f32 %v739, %v748
    %v750 = vrcp.pop %v747
    %v751 = vmul.f32 %v741, %v750
    %752 = vrot.lane.b32.xlu0 %v231, 64
    %v753 = vpop.permute.xlu0 %752
    %754 = vrot.lane.b32.xlu0 %v236, 64
    %v755 = vpop.permute.xlu0 %754
    %v759 = vsel %vm333, %v749, 0
    %v762 = vsel %vm333, %v751, 0
    %764 = vmatprep.subr.mxu0 0.0
    %765 = vmatpush1.msra.mxu0 0.0
    %766 = vmatprep.subr.mxu0 0.0
    %767 = vmatpush1.msra.mxu0 0.0
    %768 = vmatprep.subr.mxu0 0.0
    %769 = vmatpush1.msra.mxu0 0.0
    %770 = vmatprep.subr.mxu0 0.0
    %771 = vmatpush1.msra.mxu0 0.0
    %772 = vmatprep.subr.mxu0 0.0
    %773 = vmatpush1.msra.mxu0 0.0
    %774 = vmatprep.subr.mxu0 0.0
    %775 = vmatpush1.msra.mxu0 0.0
    %776 = vmatprep.subr.mxu0 0.0
    %777 = vmatpush1.msra.mxu0 0.0
    %778 = vmatprep.subr.mxu0 0.0
    %779 = vmatpush1.msra.mxu0 0.0
    %780 = vmatprep.subr.mxu0 0.0
    %781 = vmatpush1.msra.mxu0 0.0
    %782 = vmatprep.subr.mxu0 0.0
    %783 = vmatpush1.msra.mxu0 0.0
    %784 = vmatprep.subr.mxu0 0.0
    %785 = vmatpush1.msra.mxu0 0.0
    %786 = vmatprep.subr.mxu0 0.0
    %787 = vmatpush1.msra.mxu0 0.0
    %788 = vmatprep.subr.mxu0 0.0
    %789 = vmatpush1.msra.mxu0 0.0
    %790 = vmatprep.subr.mxu0 0.0
    %791 = vmatpush1.msra.mxu0 0.0
    %792 = vmatprep.subr.mxu0 0.0
    %793 = vmatpush1.msra.mxu0 %v755
    %794 = vmatprep.subr.mxu0 0.0
    %795 = vmatpush1.msra.mxu0 %v753
    %796 = vmatprep.subr.mxu0 0.0
    %797 = vmatpush2.msra.mxu0 0.0
    %798 = vmatprep.subr.mxu0 0.0
    %799 = vmatpush2.msra.mxu0 0.0
    %800 = vmatprep.subr.mxu0 0.0
    %801 = vmatpush2.msra.mxu0 0.0
    %802 = vmatprep.subr.mxu0 0.0
    %803 = vmatpush2.msra.mxu0 0.0
    %804 = vmatprep.subr.mxu0 0.0
    %805 = vmatpush2.msra.mxu0 0.0
    %806 = vmatprep.subr.mxu0 0.0
    %807 = vmatpush2.msra.mxu0 0.0
    %808 = vmatprep.subr.mxu0 0.0
    %809 = vmatpush2.msra.mxu0 0.0
    %810 = vmatprep.subr.mxu0 0.0
    %811 = vmatpush2.msra.mxu0 0.0
    %812 = vmatprep.subr.mxu0 0.0
    %813 = vmatpush2.msra.mxu0 0.0
    %814 = vmatprep.subr.mxu0 0.0
    %815 = vmatpush2.msra.mxu0 0.0
    %816 = vmatprep.subr.mxu0 0.0
    %817 = vmatpush2.msra.mxu0 0.0
    %818 = vmatprep.subr.mxu0 0.0
    %819 = vmatpush2.msra.mxu0 0.0
    %820 = vmatprep.subr.mxu0 0.0
    %821 = vmatpush2.msra.mxu0 0.0
    %822 = vmatprep.subr.mxu0 0.0
    %823 = vmatpush2.msra.mxu0 0.0
    %824 = vmatprep.subr.mxu0 0.0
    %825 = vmatpush2.msra.mxu0 0.0
    %826 = vmatprep.subr.mxu0 0.0
    %827 = vmatpush2.msra.mxu0 0.0
    %828 = vmatprep.mubr.f32.mxu0 0.0
    %829 = vmatmul.mubr.f32.gmra.mxu0 %v759
    %v830 = vpop.f32.mrf.mxu0
    %v831 = vadd.f32 0.0, %v830
    %v832 = vpop.f32.mrf.mxu0
    %833 = vmatprep.mubr.f32.mxu0 0.0
    %834 = vmatmul.mubr.f32.gmra.mxu0 %v762
    %v835 = vpop.f32.mrf.mxu0
    %v836 = vadd.f32 0.0, %v835
    %v837 = vpop.f32.mrf.mxu0
    %838 = vdwg.mxu0
    %v839 = vadd.f32 %v631, %v831
    %v840 = vadd.f32 %v636, %v836
    %841 = vrot.lane.b32.xlu0 %v239, 104
    %v842 = vpop.permute.xlu0 %841
    %843 = vrot.lane.b32.xlu0 %v240, 104
    %v844 = vpop.permute.xlu0 %843
    %845 = vrot.lane.b32.xlu0 %v156, 72
    %v846 = vpop.permute.xlu0 %845
    %847 = vrot.lane.b32.xlu0 %v161, 72
    %v848 = vpop.permute.xlu0 %847
    %v849 = vsel %vm247, %v842, 0
    %v851 = vsel %vm247, %v844, 0
    %v853 = vsel %vm247, %v846, 0
    %v855 = vsel %vm247, %v848, 0
    %857 = vmatprep.subr.mxu0 0.0
    %858 = vmatpush1.xpose.msra.mxu0 0.0
    %859 = vmatprep.subr.mxu0 0.0
    %860 = vmatpush1.xpose.msra.mxu0 0.0
    %861 = vmatprep.subr.mxu0 0.0
    %862 = vmatpush1.xpose.msra.mxu0 0.0
    %863 = vmatprep.subr.mxu0 0.0
    %864 = vmatpush1.xpose.msra.mxu0 0.0
    %865 = vmatprep.subr.mxu0 0.0
    %866 = vmatpush1.xpose.msra.mxu0 0.0
    %867 = vmatprep.subr.mxu0 0.0
    %868 = vmatpush1.xpose.msra.mxu0 0.0
    %869 = vmatprep.subr.mxu0 0.0
    %870 = vmatpush1.xpose.msra.mxu0 0.0
    %871 = vmatprep.subr.mxu0 0.0
    %872 = vmatpush1.xpose.msra.mxu0 0.0
    %873 = vmatprep.subr.mxu0 0.0
    %874 = vmatpush1.xpose.msra.mxu0 0.0
    %875 = vmatprep.subr.mxu0 0.0
    %876 = vmatpush1.xpose.msra.mxu0 0.0
    %877 = vmatprep.subr.mxu0 0.0
    %878 = vmatpush1.xpose.msra.mxu0 0.0
    %879 = vmatprep.subr.mxu0 0.0
    %880 = vmatpush1.xpose.msra.mxu0 0.0
    %881 = vmatprep.subr.mxu0 0.0
    %882 = vmatpush1.xpose.msra.mxu0 0.0
    %883 = vmatprep.subr.mxu0 0.0
    %884 = vmatpush1.xpose.msra.mxu0 0.0
    %885 = vmatprep.subr.mxu0 0.0
    %886 = vmatpush1.xpose.msra.mxu0 %v855
    %887 = vmatprep.subr.mxu0 0.0
    %888 = vmatpush1.xpose.msra.mxu0 %v853
    %889 = vmatprep.subr.mxu0 0.0
    %890 = vmatpush2.xpose.msra.mxu0 0.0
    %891 = vmatprep.subr.mxu0 0.0
    %892 = vmatpush2.xpose.msra.mxu0 0.0
    %893 = vmatprep.subr.mxu0 0.0
    %894 = vmatpush2.xpose.msra.mxu0 0.0
    %895 = vmatprep.subr.mxu0 0.0
    %896 = vmatpush2.xpose.msra.mxu0 0.0
    %897 = vmatprep.subr.mxu0 0.0
    %898 = vmatpush2.xpose.msra.mxu0 0.0
    %899 = vmatprep.subr.mxu0 0.0
    %900 = vmatpush2.xpose.msra.mxu0 0.0
    %901 = vmatprep.subr.mxu0 0.0
    %902 = vmatpush2.xpose.msra.mxu0 0.0
    %903 = vmatprep.subr.mxu0 0.0
    %904 = vmatpush2.xpose.msra.mxu0 0.0
    %905 = vmatprep.subr.mxu0 0.0
    %906 = vmatpush2.xpose.msra.mxu0 0.0
    %907 = vmatprep.subr.mxu0 0.0
    %908 = vmatpush2.xpose.msra.mxu0 0.0
    %909 = vmatprep.subr.mxu0 0.0
    %910 = vmatpush2.xpose.msra.mxu0 0.0
    %911 = vmatprep.subr.mxu0 0.0
    %912 = vmatpush2.xpose.msra.mxu0 0.0
    %913 = vmatprep.subr.mxu0 0.0
    %914 = vmatpush2.xpose.msra.mxu0 0.0
    %915 = vmatprep.subr.mxu0 0.0
    %916 = vmatpush2.xpose.msra.mxu0 0.0
    %917 = vmatprep.subr.mxu0 0.0
    %918 = vmatpush2.xpose.msra.mxu0 0.0
    %919 = vmatprep.subr.mxu0 0.0
    %920 = vmatpush2.xpose.msra.mxu0 0.0
    %921 = vmatprep.mubr.f32.mxu0 0.0
    %922 = vmatmul.mubr.f32.gmra.mxu0 %v849
    %v923 = vpop.f32.mrf.mxu0
    %v924 = vadd.f32 %v76, %v923
    %v925 = vpop.f32.mrf.mxu0
    %926 = vmatprep.mubr.f32.mxu0 0.0
    %927 = vmatmul.mubr.f32.gmra.mxu0 %v851
    %v928 = vpop.f32.mrf.mxu0
    %v929 = vadd.f32 %v77, %v928
    %v930 = vpop.f32.mrf.mxu0
    %931 = vdwg.mxu0
    %v932 = vsel %vm333, %v924, -inf
    %933 = vmax.xlane.f32.xlu0 %v932
    %v934 = vpop.xlane.xlu0 %933
    %v935 = vsel %vm333, %v929, -inf
    %936 = vmax.xlane.f32.xlu0 %v935
    %v937 = vpop.xlane.xlu0 %936
    %v938 = vsub.f32 %v924, %v934
    %v939 = vsub.f32 %v929, %v937
    %v940 = vmul.f32 %v938, 1.442695
    %v941 = vpow.pop %v940
    %v942 = vmul.f32 %v939, 1.442695
    %v943 = vpow.pop %v942
    %v944 = vsel %vm333, %v941, 0.0
    %945 = vadd.xlane.f32.xlu0 %v944
    %v946 = vpop.xlane.xlu0 %945
    %v947 = vsel %vm333, %v943, 0.0
    %948 = vadd.xlane.f32.xlu0 %v947
    %v949 = vpop.xlane.xlu0 %948
    %v950 = vrcp.pop %v946
    %v951 = vmul.f32 %v941, %v950
    %v952 = vrcp.pop %v949
    %v953 = vmul.f32 %v943, %v952
    %954 = vrot.lane.b32.xlu0 %v231, 32
    %v955 = vpop.permute.xlu0 %954
    %956 = vrot.lane.b32.xlu0 %v236, 32
    %v957 = vpop.permute.xlu0 %956
    %v961 = vsel %vm333, %v951, 0
    %v964 = vsel %vm333, %v953, 0
    %966 = vmatprep.subr.mxu0 0.0
    %967 = vmatpush1.msra.mxu0 0.0
    %968 = vmatprep.subr.mxu0 0.0
    %969 = vmatpush1.msra.mxu0 0.0
    %970 = vmatprep.subr.mxu0 0.0
    %971 = vmatpush1.msra.mxu0 0.0
    %972 = vmatprep.subr.mxu0 0.0
    %973 = vmatpush1.msra.mxu0 0.0
    %974 = vmatprep.subr.mxu0 0.0
    %975 = vmatpush1.msra.mxu0 0.0
    %976 = vmatprep.subr.mxu0 0.0
    %977 = vmatpush1.msra.mxu0 0.0
    %978 = vmatprep.subr.mxu0 0.0
    %979 = vmatpush1.msra.mxu0 0.0
    %980 = vmatprep.subr.mxu0 0.0
    %981 = vmatpush1.msra.mxu0 0.0
    %982 = vmatprep.subr.mxu0 0.0
    %983 = vmatpush1.msra.mxu0 0.0
    %984 = vmatprep.subr.mxu0 0.0
    %985 = vmatpush1.msra.mxu0 0.0
    %986 = vmatprep.subr.mxu0 0.0
    %987 = vmatpush1.msra.mxu0 0.0
    %988 = vmatprep.subr.mxu0 0.0
    %989 = vmatpush1.msra.mxu0 0.0
    %990 = vmatprep.subr.mxu0 0.0
    %991 = vmatpush1.msra.mxu0 0.0
    %992 = vmatprep.subr.mxu0 0.0
    %993 = vmatpush1.msra.mxu0 0.0
    %994 = vmatprep.subr.mxu0 0.0
    %995 = vmatpush1.msra.mxu0 %v957
    %996 = vmatprep.subr.mxu0 0.0
    %997 = vmatpush1.msra.mxu0 %v955
    %998 = vmatprep.subr.mxu0 0.0
    %999 = vmatpush2.msra.mxu0 0.0
    %1000 = vmatprep.subr.mxu0 0.0
    %1001 = vmatpush2.msra.mxu0 0.0
    %1002 = vmatprep.subr.mxu0 0.0
    %1003 = vmatpush2.msra.mxu0 0.0
    %1004 = vmatprep.subr.mxu0 0.0
    %1005 = vmatpush2.msra.mxu0 0.0
    %1006 = vmatprep.subr.mxu0 0.0
    %1007 = vmatpush2.msra.mxu0 0.0
    %1008 = vmatprep.subr.mxu0 0.0
    %1009 = vmatpush2.msra.mxu0 0.0
    %1010 = vmatprep.subr.mxu0 0.0
    %1011 = vmatpush2.msra.mxu0 0.0
    %1012 = vmatprep.subr.mxu0 0.0
    %1013 = vmatpush2.msra.mxu0 0.0
    %1014 = vmatprep.subr.mxu0 0.0
    %1015 = vmatpush2.msra.mxu0 0.0
    %1016 = vmatprep.subr.mxu0 0.0
    %1017 = vmatpush2.msra.mxu0 0.0
    %1018 = vmatprep.subr.mxu0 0.0
    %1019 = vmatpush2.msra.mxu0 0.0
    %1020 = vmatprep.subr.mxu0 0.0
    %1021 = vmatpush2.msra.mxu0 0.0
    %1022 = vmatprep.subr.mxu0 0.0
    %1023 = vmatpush2.msra.mxu0 0.0
    %1024 = vmatprep.subr.mxu0 0.0
    %1025 = vmatpush2.msra.mxu0 0.0
    %1026 = vmatprep.subr.mxu0 0.0
    %1027 = vmatpush2.msra.mxu0 0.0
    %1028 = vmatprep.subr.mxu0 0.0
    %1029 = vmatpush2.msra.mxu0 0.0
    %1030 = vmatprep.mubr.f32.mxu0 0.0
    %1031 = vmatmul.mubr.f32.gmra.mxu0 %v961
    %v1032 = vpop.f32.mrf.mxu0
    %v1033 = vadd.f32 0.0, %v1032
    %v1034 = vpop.f32.mrf.mxu0
    %1035 = vmatprep.mubr.f32.mxu0 0.0
    %1036 = vmatmul.mubr.f32.gmra.mxu0 %v964
    %v1037 = vpop.f32.mrf.mxu0
    %v1038 = vadd.f32 0.0, %v1037
    %v1039 = vpop.f32.mrf.mxu0
    %1040 = vdwg.mxu0
    %v1041 = vadd.f32 %v839, %v1033
    %v1042 = vadd.f32 %v840, %v1038
    %v1043 = vlaneseq
    %v1044 = vshrl.u32 %v1043, 7
    %v1045 = vsub.s32 0, %v1044
    %v1046 = vrot.slane %v57, %v1045
    %v1047 = vadd.f32 %v1041, %v1046
    %v1048 = vadd.f32 %v1042, %v1046
    %v1049 = vadd.f32 %v61, %v1047
    %v1050 = vadd.f32 %v62, %v1048
    %v1051 = vlaneseq
    %v1052 = vshrl.u32 %v1051, 7
    %v1053 = vsub.s32 0, %v1052
    %v1054 = vrot.slane %v55, %v1053
    %v1056 = vsel %vm82, %v1049, 0
    %v1059 = vsel %vm82, %v1050, 0
    %1061 = vmatprep.subr.mxu0 0.0
    %1062 = vmatpush1.msra.mxu0 0.0
    %1063 = vmatprep.subr.mxu0 0.0
    %1064 = vmatpush1.msra.mxu0 0.0
    %1065 = vmatprep.subr.mxu0 0.0
    %1066 = vmatpush1.msra.mxu0 0.0
    %1067 = vmatprep.subr.mxu0 0.0
    %1068 = vmatpush1.msra.mxu0 0.0
    %1069 = vmatprep.subr.mxu0 0.0
    %1070 = vmatpush1.msra.mxu0 0.0
    %1071 = vmatprep.subr.mxu0 0.0
    %1072 = vmatpush1.msra.mxu0 0.0
    %1073 = vmatprep.subr.mxu0 0.0
    %1074 = vmatpush1.msra.mxu0 0.0
    %1075 = vmatprep.subr.mxu0 0.0
    %1076 = vmatpush1.msra.mxu0 0.0
    %1077 = vmatprep.subr.mxu0 0.0
    %1078 = vmatpush1.msra.mxu0 0.0
    %1079 = vmatprep.subr.mxu0 0.0
    %1080 = vmatpush1.msra.mxu0 0.0
    %1081 = vmatprep.subr.mxu0 0.0
    %1082 = vmatpush1.msra.mxu0 0.0
    %1083 = vmatprep.subr.mxu0 0.0
    %1084 = vmatpush1.msra.mxu0 0.0
    %1085 = vmatprep.subr.mxu0 0.0
    %1086 = vmatpush1.msra.mxu0 %v41
    %1087 = vmatprep.subr.mxu0 0.0
    %1088 = vmatpush1.msra.mxu0 %v40
    %1089 = vmatprep.subr.mxu0 0.0
    %1090 = vmatpush1.msra.mxu0 %v39
    %1091 = vmatprep.subr.mxu0 0.0
    %1092 = vmatpush1.msra.mxu0 %v38
    %1093 = vmatprep.subr.mxu0 0.0
    %1094 = vmatpush2.msra.mxu0 0.0
    %1095 = vmatprep.subr.mxu0 0.0
    %1096 = vmatpush2.msra.mxu0 0.0
    %1097 = vmatprep.subr.mxu0 0.0
    %1098 = vmatpush2.msra.mxu0 0.0
    %1099 = vmatprep.subr.mxu0 0.0
    %1100 = vmatpush2.msra.mxu0 0.0
    %1101 = vmatprep.subr.mxu0 0.0
    %1102 = vmatpush2.msra.mxu0 0.0
    %1103 = vmatprep.subr.mxu0 0.0
    %1104 = vmatpush2.msra.mxu0 0.0
    %1105 = vmatprep.subr.mxu0 0.0
    %1106 = vmatpush2.msra.mxu0 0.0
    %1107 = vmatprep.subr.mxu0 0.0
    %1108 = vmatpush2.msra.mxu0 0.0
    %1109 = vmatprep.subr.mxu0 0.0
    %1110 = vmatpush2.msra.mxu0 0.0
    %1111 = vmatprep.subr.mxu0 0.0
    %1112 = vmatpush2.msra.mxu0 0.0
    %1113 = vmatprep.subr.mxu0 0.0
    %1114 = vmatpush2.msra.mxu0 0.0
    %1115 = vmatprep.subr.mxu0 0.0
    %1116 = vmatpush2.msra.mxu0 0.0
    %1117 = vmatprep.subr.mxu0 0.0
    %1118 = vmatpush2.msra.mxu0 0.0
    %1119 = vmatprep.subr.mxu0 0.0
    %1120 = vmatpush2.msra.mxu0 0.0
    %1121 = vmatprep.subr.mxu0 0.0
    %1122 = vmatpush2.msra.mxu0 0.0
    %1123 = vmatprep.subr.mxu0 0.0
    %1124 = vmatpush2.msra.mxu0 0.0
    %1125 = vmatprep.mubr.f32.mxu0 0.0
    %1126 = vmatmul.mubr.f32.gmra.mxu0 %v1056
    %v1127 = vpop.f32.mrf.mxu0
    %v1128 = vadd.f32 %v1054, %v1127
    %v1129 = vpop.f32.mrf.mxu0
    %1130 = vmatprep.mubr.f32.mxu0 0.0
    %1131 = vmatmul.mubr.f32.gmra.mxu0 %v1059
    %v1132 = vpop.f32.mrf.mxu0
    %v1133 = vadd.f32 %v1054, %v1132
    %v1134 = vpop.f32.mrf.mxu0
    %1135 = vdwg.mxu0
    %v1136 = vlaneseq
    %v1137 = vshrl.u32 %v1136, 7
    %v1138 = vsub.s32 0, %v1137
    %v1139 = vrot.slane %v56, %v1138
    %v1141 = vsel %vm82, %v63, 0
    %v1144 = vsel %vm82, %v64, 0
    %1146 = vmatprep.subr.mxu0 0.0
    %1147 = vmatpush1.msra.mxu0 0.0
    %1148 = vmatprep.subr.mxu0 0.0
    %1149 = vmatpush1.msra.mxu0 0.0
    %1150 = vmatprep.subr.mxu0 0.0
    %1151 = vmatpush1.msra.mxu0 0.0
    %1152 = vmatprep.subr.mxu0 0.0
    %1153 = vmatpush1.msra.mxu0 0.0
    %1154 = vmatprep.subr.mxu0 0.0
    %1155 = vmatpush1.msra.mxu0 0.0
    %1156 = vmatprep.subr.mxu0 0.0
    %1157 = vmatpush1.msra.mxu0 0.0
    %1158 = vmatprep.subr.mxu0 0.0
    %1159 = vmatpush1.msra.mxu0 0.0
    %1160 = vmatprep.subr.mxu0 0.0
    %1161 = vmatpush1.msra.mxu0 0.0
    %1162 = vmatprep.subr.mxu0 0.0
    %1163 = vmatpush1.msra.mxu0 0.0
    %1164 = vmatprep.subr.mxu0 0.0
    %1165 = vmatpush1.msra.mxu0 0.0
    %1166 = vmatprep.subr.mxu0 0.0
    %1167 = vmatpush1.msra.mxu0 0.0
    %1168 = vmatprep.subr.mxu0 0.0
    %1169 = vmatpush1.msra.mxu0 0.0
    %1170 = vmatprep.subr.mxu0 0.0
    %1171 = vmatpush1.msra.mxu0 %v45
    %1172 = vmatprep.subr.mxu0 0.0
    %1173 = vmatpush1.msra.mxu0 %v44
    %1174 = vmatprep.subr.mxu0 0.0
    %1175 = vmatpush1.msra.mxu0 %v43
    %1176 = vmatprep.subr.mxu0 0.0
    %1177 = vmatpush1.msra.mxu0 %v42
    %1178 = vmatprep.subr.mxu0 0.0
    %1179 = vmatpush2.msra.mxu0 0.0
    %1180 = vmatprep.subr.mxu0 0.0
    %1181 = vmatpush2.msra.mxu0 0.0
    %1182 = vmatprep.subr.mxu0 0.0
    %1183 = vmatpush2.msra.mxu0 0.0
    %1184 = vmatprep.subr.mxu0 0.0
    %1185 = vmatpush2.msra.mxu0 0.0
    %1186 = vmatprep.subr.mxu0 0.0
    %1187 = vmatpush2.msra.mxu0 0.0
    %1188 = vmatprep.subr.mxu0 0.0
    %1189 = vmatpush2.msra.mxu0 0.0
    %1190 = vmatprep.subr.mxu0 0.0
    %1191 = vmatpush2.msra.mxu0 0.0
    %1192 = vmatprep.subr.mxu0 0.0
    %1193 = vmatpush2.msra.mxu0 0.0
    %1194 = vmatprep.subr.mxu0 0.0
    %1195 = vmatpush2.msra.mxu0 0.0
    %1196 = vmatprep.subr.mxu0 0.0
    %1197 = vmatpush2.msra.mxu0 0.0
    %1198 = vmatprep.subr.mxu0 0.0
    %1199 = vmatpush2.msra.mxu0 0.0
    %1200 = vmatprep.subr.mxu0 0.0
    %1201 = vmatpush2.msra.mxu0 0.0
    %1202 = vmatprep.subr.mxu0 0.0
    %1203 = vmatpush2.msra.mxu0 0.0
    %1204 = vmatprep.subr.mxu0 0.0
    %1205 = vmatpush2.msra.mxu0 0.0
    %1206 = vmatprep.subr.mxu0 0.0
    %1207 = vmatpush2.msra.mxu0 0.0
    %1208 = vmatprep.subr.mxu0 0.0
    %1209 = vmatpush2.msra.mxu0 0.0
    %1210 = vmatprep.mubr.f32.mxu0 0.0
    %1211 = vmatmul.mubr.f32.gmra.mxu0 %v1141
    %v1212 = vpop.f32.mrf.mxu0
    %v1213 = vadd.f32 %v1139, %v1212
    %v1214 = vpop.f32.mrf.mxu0
    %1215 = vmatprep.mubr.f32.mxu0 0.0
    %1216 = vmatmul.mubr.f32.gmra.mxu0 %v1144
    %v1217 = vpop.f32.mrf.mxu0
    %v1218 = vadd.f32 %v1139, %v1217
    %v1219 = vpop.f32.mrf.mxu0
    %1220 = vdwg.mxu0
    %1221 = vmatprep.subr.mxu0 0.0
    %1222 = vmatpush1.msra.mxu0 0.0
    %1223 = vmatprep.subr.mxu0 0.0
    %1224 = vmatpush1.msra.mxu0 0.0
    %1225 = vmatprep.subr.mxu0 0.0
    %1226 = vmatpush1.msra.mxu0 0.0
    %1227 = vmatprep.subr.mxu0 0.0
    %1228 = vmatpush1.msra.mxu0 0.0
    %1229 = vmatprep.subr.mxu0 0.0
    %1230 = vmatpush1.msra.mxu0 0.0
    %1231 = vmatprep.subr.mxu0 0.0
    %1232 = vmatpush1.msra.mxu0 0.0
    %1233 = vmatprep.subr.mxu0 0.0
    %1234 = vmatpush1.msra.mxu0 0.0
    %1235 = vmatprep.subr.mxu0 0.0
    %1236 = vmatpush1.msra.mxu0 0.0
    %1237 = vmatprep.subr.mxu0 0.0
    %1238 = vmatpush1.msra.mxu0 0.0
    %1239 = vmatprep.subr.mxu0 0.0
    %1240 = vmatpush1.msra.mxu0 0.0
    %1241 = vmatprep.subr.mxu0 0.0
    %1242 = vmatpush1.msra.mxu0 0.0
    %1243 = vmatprep.subr.mxu0 0.0
    %1244 = vmatpush1.msra.mxu0 0.0
    %1245 = vmatprep.subr.mxu0 0.0
    %1246 = vmatpush1.msra.mxu0 %v33
    %1247 = vmatprep.subr.mxu0 0.0
    %1248 = vmatpush1.msra.mxu0 %v32
    %1249 = vmatprep.subr.mxu0 0.0
    %1250 = vmatpush1.msra.mxu0 %v31
    %1251 = vmatprep.subr.mxu0 0.0
    %1252 = vmatpush1.msra.mxu0 %v30
    %1253 = vmatprep.subr.mxu0 0.0
    %1254 = vmatpush2.msra.mxu0 0.0
    %1255 = vmatprep.subr.mxu0 0.0
    %1256 = vmatpush2.msra.mxu0 0.0
    %1257 = vmatprep.subr.mxu0 0.0
    %1258 = vmatpush2.msra.mxu0 0.0
    %1259 = vmatprep.subr.mxu0 0.0
    %1260 = vmatpush2.msra.mxu0 0.0
    %1261 = vmatprep.subr.mxu0 0.0
    %1262 = vmatpush2.msra.mxu0 0.0
    %1263 = vmatprep.subr.mxu0 0.0
    %1264 = vmatpush2.msra.mxu0 0.0
    %1265 = vmatprep.subr.mxu0 0.0
    %1266 = vmatpush2.msra.mxu0 0.0
    %1267 = vmatprep.subr.mxu0 0.0
    %1268 = vmatpush2.msra.mxu0 0.0
    %1269 = vmatprep.subr.mxu0 0.0
    %1270 = vmatpush2.msra.mxu0 0.0
    %1271 = vmatprep.subr.mxu0 0.0
    %1272 = vmatpush2.msra.mxu0 0.0
    %1273 = vmatprep.subr.mxu0 0.0
    %1274 = vmatpush2.msra.mxu0 0.0
    %1275 = vmatprep.subr.mxu0 0.0
    %1276 = vmatpush2.msra.mxu0 0.0
    %1277 = vmatprep.subr.mxu0 0.0
    %1278 = vmatpush2.msra.mxu0 0.0
    %1279 = vmatprep.subr.mxu0 0.0
    %1280 = vmatpush2.msra.mxu0 0.0
    %1281 = vmatprep.subr.mxu0 0.0
    %1282 = vmatpush2.msra.mxu0 0.0
    %1283 = vmatprep.subr.mxu0 0.0
    %1284 = vmatpush2.msra.mxu0 0.0
    %1285 = vmatprep.mubr.f32.mxu0 0.0
    %1286 = vmatmul.mubr.f32.gmra.mxu0 %v1141
    %v1287 = vpop.f32.mrf.mxu0
    %v1288 = vadd.f32 0.0, %v1287
    %v1289 = vpop.f32.mrf.mxu0
    %1290 = vmatprep.mubr.f32.mxu0 0.0
    %1291 = vmatmul.mubr.f32.gmra.mxu0 %v1144
    %v1292 = vpop.f32.mrf.mxu0
    %v1293 = vadd.f32 0.0, %v1292
    %v1294 = vpop.f32.mrf.mxu0
    %1295 = vdwg.mxu0
    %v1296 = vmul.f32 %v1128, 0.35355338
    %v1297 = vmul.f32 %v1133, 0.35355338
    %v1299 = vsel %vm247, %v1296, 0
    %v1302 = vsel %vm247, %v1297, 0
    %v1305 = vsel %vm247, %v1213, 0
    %v1308 = vsel %vm247, %v1218, 0
    %1310 = vmatprep.subr.mxu0 0.0
    %1311 = vmatpush1.xpose.msra.mxu0 0.0
    %1312 = vmatprep.subr.mxu0 0.0
    %1313 = vmatpush1.xpose.msra.mxu0 0.0
    %1314 = vmatprep.subr.mxu0 0.0
    %1315 = vmatpush1.xpose.msra.mxu0 0.0
    %1316 = vmatprep.subr.mxu0 0.0
    %1317 = vmatpush1.xpose.msra.mxu0 0.0
    %1318 = vmatprep.subr.mxu0 0.0
    %1319 = vmatpush1.xpose.msra.mxu0 0.0
    %1320 = vmatprep.subr.mxu0 0.0
    %1321 = vmatpush1.xpose.msra.mxu0 0.0
    %1322 = vmatprep.subr.mxu0 0.0
    %1323 = vmatpush1.xpose.msra.mxu0 0.0
    %1324 = vmatprep.subr.mxu0 0.0
    %1325 = vmatpush1.xpose.msra.mxu0 0.0
    %1326 = vmatprep.subr.mxu0 0.0
    %1327 = vmatpush1.xpose.msra.mxu0 0.0
    %1328 = vmatprep.subr.mxu0 0.0
    %1329 = vmatpush1.xpose.msra.mxu0 0.0
    %1330 = vmatprep.subr.mxu0 0.0
    %1331 = vmatpush1.xpose.msra.mxu0 0.0
    %1332 = vmatprep.subr.mxu0 0.0
    %1333 = vmatpush1.xpose.msra.mxu0 0.0
    %1334 = vmatprep.subr.mxu0 0.0
    %1335 = vmatpush1.xpose.msra.mxu0 0.0
    %1336 = vmatprep.subr.mxu0 0.0
    %1337 = vmatpush1.xpose.msra.mxu0 0.0
    %1338 = vmatprep.subr.mxu0 0.0
    %1339 = vmatpush1.xpose.msra.mxu0 %v1308
    %1340 = vmatprep.subr.mxu0 0.0
    %1341 = vmatpush1.xpose.msra.mxu0 %v1305
    %1342 = vmatprep.subr.mxu0 0.0
    %1343 = vmatpush2.xpose.msra.mxu0 0.0
    %1344 = vmatprep.subr.mxu0 0.0
    %1345 = vmatpush2.xpose.msra.mxu0 0.0
    %1346 = vmatprep.subr.mxu0 0.0
    %1347 = vmatpush2.xpose.msra.mxu0 0.0
    %1348 = vmatprep.subr.mxu0 0.0
    %1349 = vmatpush2.xpose.msra.mxu0 0.0
    %1350 = vmatprep.subr.mxu0 0.0
    %1351 = vmatpush2.xpose.msra.mxu0 0.0
    %1352 = vmatprep.subr.mxu0 0.0
    %1353 = vmatpush2.xpose.msra.mxu0 0.0
    %1354 = vmatprep.subr.mxu0 0.0
    %1355 = vmatpush2.xpose.msra.mxu0 0.0
    %1356 = vmatprep.subr.mxu0 0.0
    %1357 = vmatpush2.xpose.msra.mxu0 0.0
    %1358 = vmatprep.subr.mxu0 0.0
    %1359 = vmatpush2.xpose.msra.mxu0 0.0
    %1360 = vmatprep.subr.mxu0 0.0
    %1361 = vmatpush2.xpose.msra.mxu0 0.0
    %1362 = vmatprep.subr.mxu0 0.0
    %1363 = vmatpush2.xpose.msra.mxu0 0.0
    %1364 = vmatprep.subr.mxu0 0.0
    %1365 = vmatpush2.xpose.msra.mxu0 0.0
    %1366 = vmatprep.subr.mxu0 0.0
    %1367 = vmatpush2.xpose.msra.mxu0 0.0
    %1368 = vmatprep.subr.mxu0 0.0
    %1369 = vmatpush2.xpose.msra.mxu0 0.0
    %1370 = vmatprep.subr.mxu0 0.0
    %1371 = vmatpush2.xpose.msra.mxu0 0.0
    %1372 = vmatprep.subr.mxu0 0.0
    %1373 = vmatpush2.xpose.msra.mxu0 0.0
    %1374 = vmatprep.mubr.f32.mxu0 0.0
    %1375 = vmatmul.mubr.f32.gmra.mxu0 %v1299
    %v1376 = vpop.f32.mrf.mxu0
    %v1377 = vadd.f32 %v76, %v1376
    %v1378 = vpop.f32.mrf.mxu0
    %1379 = vmatprep.mubr.f32.mxu0 0.0
    %1380 = vmatmul.mubr.f32.gmra.mxu0 %v1302
    %v1381 = vpop.f32.mrf.mxu0
    %v1382 = vadd.f32 %v77, %v1381
    %v1383 = vpop.f32.mrf.mxu0
    %1384 = vdwg.mxu0
    %v1385 = vsel %vm333, %v1377, -inf
    %1386 = vmax.xlane.f32.xlu0 %v1385
    %v1387 = vpop.xlane.xlu0 %1386
    %v1388 = vsel %vm333, %v1382, -inf
    %1389 = vmax.xlane.f32.xlu0 %v1388
    %v1390 = vpop.xlane.xlu0 %1389
    %v1391 = vsub.f32 %v1377, %v1387
    %v1392 = vsub.f32 %v1382, %v1390
    %v1393 = vmul.f32 %v1391, 1.442695
    %v1394 = vpow.pop %v1393
    %v1395 = vmul.f32 %v1392, 1.442695
    %v1396 = vpow.pop %v1395
    %v1397 = vsel %vm333, %v1394, 0.0
    %1398 = vadd.xlane.f32.xlu0 %v1397
    %v1399 = vpop.xlane.xlu0 %1398
    %v1400 = vsel %vm333, %v1396, 0.0
    %1401 = vadd.xlane.f32.xlu0 %v1400
    %v1402 = vpop.xlane.xlu0 %1401
    %v1403 = vrcp.pop %v1399
    %v1404 = vmul.f32 %v1394, %v1403
    %v1405 = vrcp.pop %v1402
    %v1406 = vmul.f32 %v1396, %v1405
    %1407 = vrot.lane.b32.xlu0 %v1296, 120
    %v1408 = vpop.permute.xlu0 %1407
    %1409 = vrot.lane.b32.xlu0 %v1297, 120
    %v1410 = vpop.permute.xlu0 %1409
    %1411 = vrot.lane.b32.xlu0 %v1213, 120
    %v1412 = vpop.permute.xlu0 %1411
    %1413 = vrot.lane.b32.xlu0 %v1218, 120
    %v1414 = vpop.permute.xlu0 %1413
    %v1415 = vsel %vm247, %v1408, 0
    %v1417 = vsel %vm247, %v1410, 0
    %v1419 = vsel %vm247, %v1412, 0
    %v1421 = vsel %vm247, %v1414, 0
    %1423 = vmatprep.subr.mxu0 0.0
    %1424 = vmatpush1.xpose.msra.mxu0 0.0
    %1425 = vmatprep.subr.mxu0 0.0
    %1426 = vmatpush1.xpose.msra.mxu0 0.0
    %1427 = vmatprep.subr.mxu0 0.0
    %1428 = vmatpush1.xpose.msra.mxu0 0.0
    %1429 = vmatprep.subr.mxu0 0.0
    %1430 = vmatpush1.xpose.msra.mxu0 0.0
    %1431 = vmatprep.subr.mxu0 0.0
    %1432 = vmatpush1.xpose.msra.mxu0 0.0
    %1433 = vmatprep.subr.mxu0 0.0
    %1434 = vmatpush1.xpose.msra.mxu0 0.0
    %1435 = vmatprep.subr.mxu0 0.0
    %1436 = vmatpush1.xpose.msra.mxu0 0.0
    %1437 = vmatprep.subr.mxu0 0.0
    %1438 = vmatpush1.xpose.msra.mxu0 0.0
    %1439 = vmatprep.subr.mxu0 0.0
    %1440 = vmatpush1.xpose.msra.mxu0 0.0
    %1441 = vmatprep.subr.mxu0 0.0
    %1442 = vmatpush1.xpose.msra.mxu0 0.0
    %1443 = vmatprep.subr.mxu0 0.0
    %1444 = vmatpush1.xpose.msra.mxu0 0.0
    %1445 = vmatprep.subr.mxu0 0.0
    %1446 = vmatpush1.xpose.msra.mxu0 0.0
    %1447 = vmatprep.subr.mxu0 0.0
    %1448 = vmatpush1.xpose.msra.mxu0 0.0
    %1449 = vmatprep.subr.mxu0 0.0
    %1450 = vmatpush1.xpose.msra.mxu0 0.0
    %1451 = vmatprep.subr.mxu0 0.0
    %1452 = vmatpush1.xpose.msra.mxu0 %v1421
    %1453 = vmatprep.subr.mxu0 0.0
    %1454 = vmatpush1.xpose.msra.mxu0 %v1419
    %1455 = vmatprep.subr.mxu0 0.0
    %1456 = vmatpush2.xpose.msra.mxu0 0.0
    %1457 = vmatprep.subr.mxu0 0.0
    %1458 = vmatpush2.xpose.msra.mxu0 0.0
    %1459 = vmatprep.subr.mxu0 0.0
    %1460 = vmatpush2.xpose.msra.mxu0 0.0
    %1461 = vmatprep.subr.mxu0 0.0
    %1462 = vmatpush2.xpose.msra.mxu0 0.0
    %1463 = vmatprep.subr.mxu0 0.0
    %1464 = vmatpush2.xpose.msra.mxu0 0.0
    %1465 = vmatprep.subr.mxu0 0.0
    %1466 = vmatpush2.xpose.msra.mxu0 0.0
    %1467 = vmatprep.subr.mxu0 0.0
    %1468 = vmatpush2.xpose.msra.mxu0 0.0
    %1469 = vmatprep.subr.mxu0 0.0
    %1470 = vmatpush2.xpose.msra.mxu0 0.0
    %1471 = vmatprep.subr.mxu0 0.0
    %1472 = vmatpush2.xpose.msra.mxu0 0.0
    %1473 = vmatprep.subr.mxu0 0.0
    %1474 = vmatpush2.xpose.msra.mxu0 0.0
    %1475 = vmatprep.subr.mxu0 0.0
    %1476 = vmatpush2.xpose.msra.mxu0 0.0
    %1477 = vmatprep.subr.mxu0 0.0
    %1478 = vmatpush2.xpose.msra.mxu0 0.0
    %1479 = vmatprep.subr.mxu0 0.0
    %1480 = vmatpush2.xpose.msra.mxu0 0.0
    %1481 = vmatprep.subr.mxu0 0.0
    %1482 = vmatpush2.xpose.msra.mxu0 0.0
    %1483 = vmatprep.subr.mxu0 0.0
    %1484 = vmatpush2.xpose.msra.mxu0 0.0
    %1485 = vmatprep.subr.mxu0 0.0
    %1486 = vmatpush2.xpose.msra.mxu0 0.0
    %1487 = vmatprep.mubr.f32.mxu0 0.0
    %1488 = vmatmul.mubr.f32.gmra.mxu0 %v1415
    %v1489 = vpop.f32.mrf.mxu0
    %v1490 = vadd.f32 %v76, %v1489
    %v1491 = vpop.f32.mrf.mxu0
    %1492 = vmatprep.mubr.f32.mxu0 0.0
    %1493 = vmatmul.mubr.f32.gmra.mxu0 %v1417
    %v1494 = vpop.f32.mrf.mxu0
    %v1495 = vadd.f32 %v77, %v1494
    %v1496 = vpop.f32.mrf.mxu0
    %1497 = vdwg.mxu0
    %v1498 = vsel %vm333, %v1490, -inf
    %1499 = vmax.xlane.f32.xlu0 %v1498
    %v1500 = vpop.xlane.xlu0 %1499
    %v1501 = vsel %vm333, %v1495, -inf
    %1502 = vmax.xlane.f32.xlu0 %v1501
    %v1503 = vpop.xlane.xlu0 %1502
    %v1504 = vsub.f32 %v1490, %v1500
    %v1505 = vsub.f32 %v1495, %v1503
    %v1506 = vmul.f32 %v1504, 1.442695
    %v1507 = vpow.pop %v1506
    %v1508 = vmul.f32 %v1505, 1.442695
    %v1509 = vpow.pop %v1508
    %v1510 = vsel %vm333, %v1507, 0.0
    %1511 = vadd.xlane.f32.xlu0 %v1510
    %v1512 = vpop.xlane.xlu0 %1511
    %v1513 = vsel %vm333, %v1509, 0.0
    %1514 = vadd.xlane.f32.xlu0 %v1513
    %v1515 = vpop.xlane.xlu0 %1514
    %v1516 = vrcp.pop %v1512
    %v1517 = vmul.f32 %v1507, %v1516
    %v1518 = vrcp.pop %v1515
    %v1519 = vmul.f32 %v1509, %v1518
    %1522 = vrot.lane.b32.xlu0 %v1288, 96
    %v1523 = vpop.permute.xlu0 %1522
    %1524 = vrot.lane.b32.xlu0 %v1293, 96
    %v1525 = vpop.permute.xlu0 %1524
    %v1529 = vsel %vm333, %v1517, 0
    %v1532 = vsel %vm333, %v1519, 0
    %1534 = vmatprep.subr.mxu0 0.0
    %1535 = vmatpush1.msra.mxu0 0.0
    %1536 = vmatprep.subr.mxu0 0.0
    %1537 = vmatpush1.msra.mxu0 0.0
    %1538 = vmatprep.subr.mxu0 0.0
    %1539 = vmatpush1.msra.mxu0 0.0
    %1540 = vmatprep.subr.mxu0 0.0
    %1541 = vmatpush1.msra.mxu0 0.0
    %1542 = vmatprep.subr.mxu0 0.0
    %1543 = vmatpush1.msra.mxu0 0.0
    %1544 = vmatprep.subr.mxu0 0.0
    %1545 = vmatpush1.msra.mxu0 0.0
    %1546 = vmatprep.subr.mxu0 0.0
    %1547 = vmatpush1.msra.mxu0 0.0
    %1548 = vmatprep.subr.mxu0 0.0
    %1549 = vmatpush1.msra.mxu0 0.0
    %1550 = vmatprep.subr.mxu0 0.0
    %1551 = vmatpush1.msra.mxu0 0.0
    %1552 = vmatprep.subr.mxu0 0.0
    %1553 = vmatpush1.msra.mxu0 0.0
    %1554 = vmatprep.subr.mxu0 0.0
    %1555 = vmatpush1.msra.mxu0 0.0
    %1556 = vmatprep.subr.mxu0 0.0
    %1557 = vmatpush1.msra.mxu0 0.0
    %1558 = vmatprep.subr.mxu0 0.0
    %1559 = vmatpush1.msra.mxu0 0.0
    %1560 = vmatprep.subr.mxu0 0.0
    %1561 = vmatpush1.msra.mxu0 0.0
    %1562 = vmatprep.subr.mxu0 0.0
    %1563 = vmatpush1.msra.mxu0 %v1525
    %1564 = vmatprep.subr.mxu0 0.0
    %1565 = vmatpush1.msra.mxu0 %v1523
    %1566 = vmatprep.subr.mxu0 0.0
    %1567 = vmatpush2.msra.mxu0 0.0
    %1568 = vmatprep.subr.mxu0 0.0
    %1569 = vmatpush2.msra.mxu0 0.0
    %1570 = vmatprep.subr.mxu0 0.0
    %1571 = vmatpush2.msra.mxu0 0.0
    %1572 = vmatprep.subr.mxu0 0.0
    %1573 = vmatpush2.msra.mxu0 0.0
    %1574 = vmatprep.subr.mxu0 0.0
    %1575 = vmatpush2.msra.mxu0 0.0
    %1576 = vmatprep.subr.mxu0 0.0
    %1577 = vmatpush2.msra.mxu0 0.0
    %1578 = vmatprep.subr.mxu0 0.0
    %1579 = vmatpush2.msra.mxu0 0.0
    %1580 = vmatprep.subr.mxu0 0.0
    %1581 = vmatpush2.msra.mxu0 0.0
    %1582 = vmatprep.subr.mxu0 0.0
    %1583 = vmatpush2.msra.mxu0 0.0
    %1584 = vmatprep.subr.mxu0 0.0
    %1585 = vmatpush2.msra.mxu0 0.0
    %1586 = vmatprep.subr.mxu0 0.0
    %1587 = vmatpush2.msra.mxu0 0.0
    %1588 = vmatprep.subr.mxu0 0.0
    %1589 = vmatpush2.msra.mxu0 0.0
    %1590 = vmatprep.subr.mxu0 0.0
    %1591 = vmatpush2.msra.mxu0 0.0
    %1592 = vmatprep.subr.mxu0 0.0
    %1593 = vmatpush2.msra.mxu0 0.0
    %1594 = vmatprep.subr.mxu0 0.0
    %1595 = vmatpush2.msra.mxu0 0.0
    %1596 = vmatprep.subr.mxu0 0.0
    %1597 = vmatpush2.msra.mxu0 0.0
    %1598 = vmatprep.mubr.f32.mxu0 0.0
    %1599 = vmatmul.mubr.f32.gmra.mxu0 %v1529
    %v1600 = vpop.f32.mrf.mxu0
    %v1601 = vadd.f32 0.0, %v1600
    %v1602 = vpop.f32.mrf.mxu0
    %1603 = vmatprep.mubr.f32.mxu0 0.0
    %1604 = vmatmul.mubr.f32.gmra.mxu0 %v1532
    %v1605 = vpop.f32.mrf.mxu0
    %v1606 = vadd.f32 0.0, %v1605
    %v1607 = vpop.f32.mrf.mxu0
    %1608 = vdwg.mxu0
    %v1610 = vsel %vm333, %v1404, 0
    %v1613 = vsel %vm333, %v1406, 0
    %1615 = vmatprep.subr.mxu0 0.0
    %1616 = vmatpush1.msra.mxu0 0.0
    %1617 = vmatprep.subr.mxu0 0.0
    %1618 = vmatpush1.msra.mxu0 0.0
    %1619 = vmatprep.subr.mxu0 0.0
    %1620 = vmatpush1.msra.mxu0 0.0
    %1621 = vmatprep.subr.mxu0 0.0
    %1622 = vmatpush1.msra.mxu0 0.0
    %1623 = vmatprep.subr.mxu0 0.0
    %1624 = vmatpush1.msra.mxu0 0.0
    %1625 = vmatprep.subr.mxu0 0.0
    %1626 = vmatpush1.msra.mxu0 0.0
    %1627 = vmatprep.subr.mxu0 0.0
    %1628 = vmatpush1.msra.mxu0 0.0
    %1629 = vmatprep.subr.mxu0 0.0
    %1630 = vmatpush1.msra.mxu0 0.0
    %1631 = vmatprep.subr.mxu0 0.0
    %1632 = vmatpush1.msra.mxu0 0.0
    %1633 = vmatprep.subr.mxu0 0.0
    %1634 = vmatpush1.msra.mxu0 0.0
    %1635 = vmatprep.subr.mxu0 0.0
    %1636 = vmatpush1.msra.mxu0 0.0
    %1637 = vmatprep.subr.mxu0 0.0
    %1638 = vmatpush1.msra.mxu0 0.0
    %1639 = vmatprep.subr.mxu0 0.0
    %1640 = vmatpush1.msra.mxu0 0.0
    %1641 = vmatprep.subr.mxu0 0.0
    %1642 = vmatpush1.msra.mxu0 0.0
    %1643 = vmatprep.subr.mxu0 0.0
    %1644 = vmatpush1.msra.mxu0 %v1293
    %1645 = vmatprep.subr.mxu0 0.0
    %1646 = vmatpush1.msra.mxu0 %v1288
    %1647 = vmatprep.subr.mxu0 0.0
    %1648 = vmatpush2.msra.mxu0 0.0
    %1649 = vmatprep.subr.mxu0 0.0
    %1650 = vmatpush2.msra.mxu0 0.0
    %1651 = vmatprep.subr.mxu0 0.0
    %1652 = vmatpush2.msra.mxu0 0.0
    %1653 = vmatprep.subr.mxu0 0.0
    %1654 = vmatpush2.msra.mxu0 0.0
    %1655 = vmatprep.subr.mxu0 0.0
    %1656 = vmatpush2.msra.mxu0 0.0
    %1657 = vmatprep.subr.mxu0 0.0
    %1658 = vmatpush2.msra.mxu0 0.0
    %1659 = vmatprep.subr.mxu0 0.0
    %1660 = vmatpush2.msra.mxu0 0.0
    %1661 = vmatprep.subr.mxu0 0.0
    %1662 = vmatpush2.msra.mxu0 0.0
    %1663 = vmatprep.subr.mxu0 0.0
    %1664 = vmatpush2.msra.mxu0 0.0
    %1665 = vmatprep.subr.mxu0 0.0
    %1666 = vmatpush2.msra.mxu0 0.0
    %1667 = vmatprep.subr.mxu0 0.0
    %1668 = vmatpush2.msra.mxu0 0.0
    %1669 = vmatprep.subr.mxu0 0.0
    %1670 = vmatpush2.msra.mxu0 0.0
    %1671 = vmatprep.subr.mxu0 0.0
    %1672 = vmatpush2.msra.mxu0 0.0
    %1673 = vmatprep.subr.mxu0 0.0
    %1674 = vmatpush2.msra.mxu0 0.0
    %1675 = vmatprep.subr.mxu0 0.0
    %1676 = vmatpush2.msra.mxu0 0.0
    %1677 = vmatprep.subr.mxu0 0.0
    %1678 = vmatpush2.msra.mxu0 0.0
    %1679 = vmatprep.mubr.f32.mxu0 0.0
    %1680 = vmatmul.mubr.f32.gmra.mxu0 %v1610
    %v1681 = vpop.f32.mrf.mxu0
    %v1682 = vadd.f32 %v1601, %v1681
    %v1683 = vpop.f32.mrf.mxu0
    %1684 = vmatprep.mubr.f32.mxu0 0.0
    %1685 = vmatmul.mubr.f32.gmra.mxu0 %v1613
    %v1686 = vpop.f32.mrf.mxu0
    %v1687 = vadd.f32 %v1606, %v1686
    %v1688 = vpop.f32.mrf.mxu0
    %1689 = vdwg.mxu0
    %1690 = vrot.lane.b32.xlu0 %v1296, 112
    %v1691 = vpop.permute.xlu0 %1690
    %1692 = vrot.lane.b32.xlu0 %v1297, 112
    %v1693 = vpop.permute.xlu0 %1692
    %1694 = vrot.lane.b32.xlu0 %v1213, 112
    %v1695 = vpop.permute.xlu0 %1694
    %1696 = vrot.lane.b32.xlu0 %v1218, 112
    %v1697 = vpop.permute.xlu0 %1696
    %v1698 = vsel %vm247, %v1691, 0
    %v1700 = vsel %vm247, %v1693, 0
    %v1702 = vsel %vm247, %v1695, 0
    %v1704 = vsel %vm247, %v1697, 0
    %1706 = vmatprep.subr.mxu0 0.0
    %1707 = vmatpush1.xpose.msra.mxu0 0.0
    %1708 = vmatprep.subr.mxu0 0.0
    %1709 = vmatpush1.xpose.msra.mxu0 0.0
    %1710 = vmatprep.subr.mxu0 0.0
    %1711 = vmatpush1.xpose.msra.mxu0 0.0
    %1712 = vmatprep.subr.mxu0 0.0
    %1713 = vmatpush1.xpose.msra.mxu0 0.0
    %1714 = vmatprep.subr.mxu0 0.0
    %1715 = vmatpush1.xpose.msra.mxu0 0.0
    %1716 = vmatprep.subr.mxu0 0.0
    %1717 = vmatpush1.xpose.msra.mxu0 0.0
    %1718 = vmatprep.subr.mxu0 0.0
    %1719 = vmatpush1.xpose.msra.mxu0 0.0
    %1720 = vmatprep.subr.mxu0 0.0
    %1721 = vmatpush1.xpose.msra.mxu0 0.0
    %1722 = vmatprep.subr.mxu0 0.0
    %1723 = vmatpush1.xpose.msra.mxu0 0.0
    %1724 = vmatprep.subr.mxu0 0.0
    %1725 = vmatpush1.xpose.msra.mxu0 0.0
    %1726 = vmatprep.subr.mxu0 0.0
    %1727 = vmatpush1.xpose.msra.mxu0 0.0
    %1728 = vmatprep.subr.mxu0 0.0
    %1729 = vmatpush1.xpose.msra.mxu0 0.0
    %1730 = vmatprep.subr.mxu0 0.0
    %1731 = vmatpush1.xpose.msra.mxu0 0.0
    %1732 = vmatprep.subr.mxu0 0.0
    %1733 = vmatpush1.xpose.msra.mxu0 0.0
    %1734 = vmatprep.subr.mxu0 0.0
    %1735 = vmatpush1.xpose.msra.mxu0 %v1704
    %1736 = vmatprep.subr.mxu0 0.0
    %1737 = vmatpush1.xpose.msra.mxu0 %v1702
    %1738 = vmatprep.subr.mxu0 0.0
    %1739 = vmatpush2.xpose.msra.mxu0 0.0
    %1740 = vmatprep.subr.mxu0 0.0
    %1741 = vmatpush2.xpose.msra.mxu0 0.0
    %1742 = vmatprep.subr.mxu0 0.0
    %1743 = vmatpush2.xpose.msra.mxu0 0.0
    %1744 = vmatprep.subr.mxu0 0.0
    %1745 = vmatpush2.xpose.msra.mxu0 0.0
    %1746 = vmatprep.subr.mxu0 0.0
    %1747 = vmatpush2.xpose.msra.mxu0 0.0
    %1748 = vmatprep.subr.mxu0 0.0
    %1749 = vmatpush2.xpose.msra.mxu0 0.0
    %1750 = vmatprep.subr.mxu0 0.0
    %1751 = vmatpush2.xpose.msra.mxu0 0.0
    %1752 = vmatprep.subr.mxu0 0.0
    %1753 = vmatpush2.xpose.msra.mxu0 0.0
    %1754 = vmatprep.subr.mxu0 0.0
    %1755 = vmatpush2.xpose.msra.mxu0 0.0
    %1756 = vmatprep.subr.mxu0 0.0
    %1757 = vmatpush2.xpose.msra.mxu0 0.0
    %1758 = vmatprep.subr.mxu0 0.0
    %1759 = vmatpush2.xpose.msra.mxu0 0.0
    %1760 = vmatprep.subr.mxu0 0.0
    %1761 = vmatpush2.xpose.msra.mxu0 0.0
    %1762 = vmatprep.subr.mxu0 0.0
    %1763 = vmatpush2.xpose.msra.mxu0 0.0
    %1764 = vmatprep.subr.mxu0 0.0
    %1765 = vmatpush2.xpose.msra.mxu0 0.0
    %1766 = vmatprep.subr.mxu0 0.0
    %1767 = vmatpush2.xpose.msra.mxu0 0.0
    %1768 = vmatprep.subr.mxu0 0.0
    %1769 = vmatpush2.xpose.msra.mxu0 0.0
    %1770 = vmatprep.mubr.f32.mxu0 0.0
    %1771 = vmatmul.mubr.f32.gmra.mxu0 %v1698
    %v1772 = vpop.f32.mrf.mxu0
    %v1773 = vadd.f32 %v76, %v1772
    %v1774 = vpop.f32.mrf.mxu0
    %1775 = vmatprep.mubr.f32.mxu0 0.0
    %1776 = vmatmul.mubr.f32.gmra.mxu0 %v1700
    %v1777 = vpop.f32.mrf.mxu0
    %v1778 = vadd.f32 %v77, %v1777
    %v1779 = vpop.f32.mrf.mxu0
    %1780 = vdwg.mxu0
    %v1781 = vsel %vm333, %v1773, -inf
    %1782 = vmax.xlane.f32.xlu0 %v1781
    %v1783 = vpop.xlane.xlu0 %1782
    %v1784 = vsel %vm333, %v1778, -inf
    %1785 = vmax.xlane.f32.xlu0 %v1784
    %v1786 = vpop.xlane.xlu0 %1785
    %v1787 = vsub.f32 %v1773, %v1783
    %v1788 = vsub.f32 %v1778, %v1786
    %v1789 = vmul.f32 %v1787, 1.442695
    %v1790 = vpow.pop %v1789
    %v1791 = vmul.f32 %v1788, 1.442695
    %v1792 = vpow.pop %v1791
    %v1793 = vsel %vm333, %v1790, 0.0
    %1794 = vadd.xlane.f32.xlu0 %v1793
    %v1795 = vpop.xlane.xlu0 %1794
    %v1796 = vsel %vm333, %v1792, 0.0
    %1797 = vadd.xlane.f32.xlu0 %v1796
    %v1798 = vpop.xlane.xlu0 %1797
    %v1799 = vrcp.pop %v1795
    %v1800 = vmul.f32 %v1790, %v1799
    %v1801 = vrcp.pop %v1798
    %v1802 = vmul.f32 %v1792, %v1801
    %1803 = vrot.lane.b32.xlu0 %v1288, 64
    %v1804 = vpop.permute.xlu0 %1803
    %1805 = vrot.lane.b32.xlu0 %v1293, 64
    %v1806 = vpop.permute.xlu0 %1805
    %v1810 = vsel %vm333, %v1800, 0
    %v1813 = vsel %vm333, %v1802, 0
    %1815 = vmatprep.subr.mxu0 0.0
    %1816 = vmatpush1.msra.mxu0 0.0
    %1817 = vmatprep.subr.mxu0 0.0
    %1818 = vmatpush1.msra.mxu0 0.0
    %1819 = vmatprep.subr.mxu0 0.0
    %1820 = vmatpush1.msra.mxu0 0.0
    %1821 = vmatprep.subr.mxu0 0.0
    %1822 = vmatpush1.msra.mxu0 0.0
    %1823 = vmatprep.subr.mxu0 0.0
    %1824 = vmatpush1.msra.mxu0 0.0
    %1825 = vmatprep.subr.mxu0 0.0
    %1826 = vmatpush1.msra.mxu0 0.0
    %1827 = vmatprep.subr.mxu0 0.0
    %1828 = vmatpush1.msra.mxu0 0.0
    %1829 = vmatprep.subr.mxu0 0.0
    %1830 = vmatpush1.msra.mxu0 0.0
    %1831 = vmatprep.subr.mxu0 0.0
    %1832 = vmatpush1.msra.mxu0 0.0
    %1833 = vmatprep.subr.mxu0 0.0
    %1834 = vmatpush1.msra.mxu0 0.0
    %1835 = vmatprep.subr.mxu0 0.0
    %1836 = vmatpush1.msra.mxu0 0.0
    %1837 = vmatprep.subr.mxu0 0.0
    %1838 = vmatpush1.msra.mxu0 0.0
    %1839 = vmatprep.subr.mxu0 0.0
    %1840 = vmatpush1.msra.mxu0 0.0
    %1841 = vmatprep.subr.mxu0 0.0
    %1842 = vmatpush1.msra.mxu0 0.0
    %1843 = vmatprep.subr.mxu0 0.0
    %1844 = vmatpush1.msra.mxu0 %v1806
    %1845 = vmatprep.subr.mxu0 0.0
    %1846 = vmatpush1.msra.mxu0 %v1804
    %1847 = vmatprep.subr.mxu0 0.0
    %1848 = vmatpush2.msra.mxu0 0.0
    %1849 = vmatprep.subr.mxu0 0.0
    %1850 = vmatpush2.msra.mxu0 0.0
    %1851 = vmatprep.subr.mxu0 0.0
    %1852 = vmatpush2.msra.mxu0 0.0
    %1853 = vmatprep.subr.mxu0 0.0
    %1854 = vmatpush2.msra.mxu0 0.0
    %1855 = vmatprep.subr.mxu0 0.0
    %1856 = vmatpush2.msra.mxu0 0.0
    %1857 = vmatprep.subr.mxu0 0.0
    %1858 = vmatpush2.msra.mxu0 0.0
    %1859 = vmatprep.subr.mxu0 0.0
    %1860 = vmatpush2.msra.mxu0 0.0
    %1861 = vmatprep.subr.mxu0 0.0
    %1862 = vmatpush2.msra.mxu0 0.0
    %1863 = vmatprep.subr.mxu0 0.0
    %1864 = vmatpush2.msra.mxu0 0.0
    %1865 = vmatprep.subr.mxu0 0.0
    %1866 = vmatpush2.msra.mxu0 0.0
    %1867 = vmatprep.subr.mxu0 0.0
    %1868 = vmatpush2.msra.mxu0 0.0
    %1869 = vmatprep.subr.mxu0 0.0
    %1870 = vmatpush2.msra.mxu0 0.0
    %1871 = vmatprep.subr.mxu0 0.0
    %1872 = vmatpush2.msra.mxu0 0.0
    %1873 = vmatprep.subr.mxu0 0.0
    %1874 = vmatpush2.msra.mxu0 0.0
    %1875 = vmatprep.subr.mxu0 0.0
    %1876 = vmatpush2.msra.mxu0 0.0
    %1877 = vmatprep.subr.mxu0 0.0
    %1878 = vmatpush2.msra.mxu0 0.0
    %1879 = vmatprep.mubr.f32.mxu0 0.0
    %1880 = vmatmul.mubr.f32.gmra.mxu0 %v1810
    %v1881 = vpop.f32.mrf.mxu0
    %v1882 = vadd.f32 0.0, %v1881
    %v1883 = vpop.f32.mrf.mxu0
    %1884 = vmatprep.mubr.f32.mxu0 0.0
    %1885 = vmatmul.mubr.f32.gmra.mxu0 %v1813
    %v1886 = vpop.f32.mrf.mxu0
    %v1887 = vadd.f32 0.0, %v1886
    %v1888 = vpop.f32.mrf.mxu0
    %1889 = vdwg.mxu0
    %v1890 = vadd.f32 %v1682, %v1882
    %v1891 = vadd.f32 %v1687, %v1887
    %1892 = vrot.lane.b32.xlu0 %v1296, 104
    %v1893 = vpop.permute.xlu0 %1892
    %1894 = vrot.lane.b32.xlu0 %v1297, 104
    %v1895 = vpop.permute.xlu0 %1894
    %1896 = vrot.lane.b32.xlu0 %v1213, 104
    %v1897 = vpop.permute.xlu0 %1896
    %1898 = vrot.lane.b32.xlu0 %v1218, 104
    %v1899 = vpop.permute.xlu0 %1898
    %v1900 = vsel %vm247, %v1893, 0
    %v1902 = vsel %vm247, %v1895, 0
    %v1904 = vsel %vm247, %v1897, 0
    %v1906 = vsel %vm247, %v1899, 0
    %1908 = vmatprep.subr.mxu0 0.0
    %1909 = vmatpush1.xpose.msra.mxu0 0.0
    %1910 = vmatprep.subr.mxu0 0.0
    %1911 = vmatpush1.xpose.msra.mxu0 0.0
    %1912 = vmatprep.subr.mxu0 0.0
    %1913 = vmatpush1.xpose.msra.mxu0 0.0
    %1914 = vmatprep.subr.mxu0 0.0
    %1915 = vmatpush1.xpose.msra.mxu0 0.0
    %1916 = vmatprep.subr.mxu0 0.0
    %1917 = vmatpush1.xpose.msra.mxu0 0.0
    %1918 = vmatprep.subr.mxu0 0.0
    %1919 = vmatpush1.xpose.msra.mxu0 0.0
    %1920 = vmatprep.subr.mxu0 0.0
    %1921 = vmatpush1.xpose.msra.mxu0 0.0
    %1922 = vmatprep.subr.mxu0 0.0
    %1923 = vmatpush1.xpose.msra.mxu0 0.0
    %1924 = vmatprep.subr.mxu0 0.0
    %1925 = vmatpush1.xpose.msra.mxu0 0.0
    %1926 = vmatprep.subr.mxu0 0.0
    %1927 = vmatpush1.xpose.msra.mxu0 0.0
    %1928 = vmatprep.subr.mxu0 0.0
    %1929 = vmatpush1.xpose.msra.mxu0 0.0
    %1930 = vmatprep.subr.mxu0 0.0
    %1931 = vmatpush1.xpose.msra.mxu0 0.0
    %1932 = vmatprep.subr.mxu0 0.0
    %1933 = vmatpush1.xpose.msra.mxu0 0.0
    %1934 = vmatprep.subr.mxu0 0.0
    %1935 = vmatpush1.xpose.msra.mxu0 0.0
    %1936 = vmatprep.subr.mxu0 0.0
    %1937 = vmatpush1.xpose.msra.mxu0 %v1906
    %1938 = vmatprep.subr.mxu0 0.0
    %1939 = vmatpush1.xpose.msra.mxu0 %v1904
    %1940 = vmatprep.subr.mxu0 0.0
    %1941 = vmatpush2.xpose.msra.mxu0 0.0
    %1942 = vmatprep.subr.mxu0 0.0
    %1943 = vmatpush2.xpose.msra.mxu0 0.0
    %1944 = vmatprep.subr.mxu0 0.0
    %1945 = vmatpush2.xpose.msra.mxu0 0.0
    %1946 = vmatprep.subr.mxu0 0.0
    %1947 = vmatpush2.xpose.msra.mxu0 0.0
    %1948 = vmatprep.subr.mxu0 0.0
    %1949 = vmatpush2.xpose.msra.mxu0 0.0
    %1950 = vmatprep.subr.mxu0 0.0
    %1951 = vmatpush2.xpose.msra.mxu0 0.0
    %1952 = vmatprep.subr.mxu0 0.0
    %1953 = vmatpush2.xpose.msra.mxu0 0.0
    %1954 = vmatprep.subr.mxu0 0.0
    %1955 = vmatpush2.xpose.msra.mxu0 0.0
    %1956 = vmatprep.subr.mxu0 0.0
    %1957 = vmatpush2.xpose.msra.mxu0 0.0
    %1958 = vmatprep.subr.mxu0 0.0
    %1959 = vmatpush2.xpose.msra.mxu0 0.0
    %1960 = vmatprep.subr.mxu0 0.0
    %1961 = vmatpush2.xpose.msra.mxu0 0.0
    %1962 = vmatprep.subr.mxu0 0.0
    %1963 = vmatpush2.xpose.msra.mxu0 0.0
    %1964 = vmatprep.subr.mxu0 0.0
    %1965 = vmatpush2.xpose.msra.mxu0 0.0
    %1966 = vmatprep.subr.mxu0 0.0
    %1967 = vmatpush2.xpose.msra.mxu0 0.0
    %1968 = vmatprep.subr.mxu0 0.0
    %1969 = vmatpush2.xpose.msra.mxu0 0.0
    %1970 = vmatprep.subr.mxu0 0.0
    %1971 = vmatpush2.xpose.msra.mxu0 0.0
    %1972 = vmatprep.mubr.f32.mxu0 0.0
    %1973 = vmatmul.mubr.f32.gmra.mxu0 %v1900
    %v1974 = vpop.f32.mrf.mxu0
    %v1975 = vadd.f32 %v76, %v1974
    %v1976 = vpop.f32.mrf.mxu0
    %1977 = vmatprep.mubr.f32.mxu0 0.0
    %1978 = vmatmul.mubr.f32.gmra.mxu0 %v1902
    %v1979 = vpop.f32.mrf.mxu0
    %v1980 = vadd.f32 %v77, %v1979
    %v1981 = vpop.f32.mrf.mxu0
    %1982 = vdwg.mxu0
    %v1983 = vsel %vm333, %v1975, -inf
    %1984 = vmax.xlane.f32.xlu0 %v1983
    %v1985 = vpop.xlane.xlu0 %1984
    %v1986 = vsel %vm333, %v1980, -inf
    %1987 = vmax.xlane.f32.xlu0 %v1986
    %v1988 = vpop.xlane.xlu0 %1987
    %v1989 = vsub.f32 %v1975, %v1985
    %v1990 = vsub.f32 %v1980, %v1988
    %v1991 = vmul.f32 %v1989, 1.442695
    %v1992 = vpow.pop %v1991
    %v1993 = vmul.f32 %v1990, 1.442695
    %v1994 = vpow.pop %v1993
    %v1995 = vsel %vm333, %v1992, 0.0
    %1996 = vadd.xlane.f32.xlu0 %v1995
    %v1997 = vpop.xlane.xlu0 %1996
    %v1998 = vsel %vm333, %v1994, 0.0
    %1999 = vadd.xlane.f32.xlu0 %v1998
    %v2000 = vpop.xlane.xlu0 %1999
    %v2001 = vrcp.pop %v1997
    %v2002 = vmul.f32 %v1992, %v2001
    %v2003 = vrcp.pop %v2000
    %v2004 = vmul.f32 %v1994, %v2003
    %2005 = vrot.lane.b32.xlu0 %v1288, 32
    %v2006 = vpop.permute.xlu0 %2005
    %2007 = vrot.lane.b32.xlu0 %v1293, 32
    %v2008 = vpop.permute.xlu0 %2007
    %v2012 = vsel %vm333, %v2002, 0
    %v2015 = vsel %vm333, %v2004, 0
    %2017 = vmatprep.subr.mxu0 0.0
    %2018 = vmatpush1.msra.mxu0 0.0
    %2019 = vmatprep.subr.mxu0 0.0
    %2020 = vmatpush1.msra.mxu0 0.0
    %2021 = vmatprep.subr.mxu0 0.0
    %2022 = vmatpush1.msra.mxu0 0.0
    %2023 = vmatprep.subr.mxu0 0.0
    %2024 = vmatpush1.msra.mxu0 0.0
    %2025 = vmatprep.subr.mxu0 0.0
    %2026 = vmatpush1.msra.mxu0 0.0
    %2027 = vmatprep.subr.mxu0 0.0
    %2028 = vmatpush1.msra.mxu0 0.0
    %2029 = vmatprep.subr.mxu0 0.0
    %2030 = vmatpush1.msra.mxu0 0.0
    %2031 = vmatprep.subr.mxu0 0.0
    %2032 = vmatpush1.msra.mxu0 0.0
    %2033 = vmatprep.subr.mxu0 0.0
    %2034 = vmatpush1.msra.mxu0 0.0
    %2035 = vmatprep.subr.mxu0 0.0
    %2036 = vmatpush1.msra.mxu0 0.0
    %2037 = vmatprep.subr.mxu0 0.0
    %2038 = vmatpush1.msra.mxu0 0.0
    %2039 = vmatprep.subr.mxu0 0.0
    %2040 = vmatpush1.msra.mxu0 0.0
    %2041 = vmatprep.subr.mxu0 0.0
    %2042 = vmatpush1.msra.mxu0 0.0
    %2043 = vmatprep.subr.mxu0 0.0
    %2044 = vmatpush1.msra.mxu0 0.0
    %2045 = vmatprep.subr.mxu0 0.0
    %2046 = vmatpush1.msra.mxu0 %v2008
    %2047 = vmatprep.subr.mxu0 0.0
    %2048 = vmatpush1.msra.mxu0 %v2006
    %2049 = vmatprep.subr.mxu0 0.0
    %2050 = vmatpush2.msra.mxu0 0.0
    %2051 = vmatprep.subr.mxu0 0.0
    %2052 = vmatpush2.msra.mxu0 0.0
    %2053 = vmatprep.subr.mxu0 0.0
    %2054 = vmatpush2.msra.mxu0 0.0
    %2055 = vmatprep.subr.mxu0 0.0
    %2056 = vmatpush2.msra.mxu0 0.0
    %2057 = vmatprep.subr.mxu0 0.0
    %2058 = vmatpush2.msra.mxu0 0.0
    %2059 = vmatprep.subr.mxu0 0.0
    %2060 = vmatpush2.msra.mxu0 0.0
    %2061 = vmatprep.subr.mxu0 0.0
    %2062 = vmatpush2.msra.mxu0 0.0
    %2063 = vmatprep.subr.mxu0 0.0
    %2064 = vmatpush2.msra.mxu0 0.0
    %2065 = vmatprep.subr.mxu0 0.0
    %2066 = vmatpush2.msra.mxu0 0.0
    %2067 = vmatprep.subr.mxu0 0.0
    %2068 = vmatpush2.msra.mxu0 0.0
    %2069 = vmatprep.subr.mxu0 0.0
    %2070 = vmatpush2.msra.mxu0 0.0
    %2071 = vmatprep.subr.mxu0 0.0
    %2072 = vmatpush2.msra.mxu0 0.0
    %2073 = vmatprep.subr.mxu0 0.0
    %2074 = vmatpush2.msra.mxu0 0.0
    %2075 = vmatprep.subr.mxu0 0.0
    %2076 = vmatpush2.msra.mxu0 0.0
    %2077 = vmatprep.subr.mxu0 0.0
    %2078 = vmatpush2.msra.mxu0 0.0
    %2079 = vmatprep.subr.mxu0 0.0
    %2080 = vmatpush2.msra.mxu0 0.0
    %2081 = vmatprep.mubr.f32.mxu0 0.0
    %2082 = vmatmul.mubr.f32.gmra.mxu0 %v2012
    %v2083 = vpop.f32.mrf.mxu0
    %v2084 = vadd.f32 0.0, %v2083
    %v2085 = vpop.f32.mrf.mxu0
    %2086 = vmatprep.mubr.f32.mxu0 0.0
    %2087 = vmatmul.mubr.f32.gmra.mxu0 %v2015
    %v2088 = vpop.f32.mrf.mxu0
    %v2089 = vadd.f32 0.0, %v2088
    %v2090 = vpop.f32.mrf.mxu0
    %2091 = vdwg.mxu0
    %v2092 = vadd.f32 %v1890, %v2084
    %v2093 = vadd.f32 %v1891, %v2089
    %v2094 = vlaneseq
    %v2095 = vshrl.u32 %v2094, 7
    %v2096 = vsub.s32 0, %v2095
    %v2097 = vrot.slane %v58, %v2096
    %v2098 = vadd.f32 %v2092, %v2097
    %v2099 = vadd.f32 %v2093, %v2097
    %v2100 = vadd.f32 %v1049, %v2098
    %v2101 = vadd.f32 %v1050, %v2099
    %v2102 = vlaneseq
    %v2103 = vshrl.u32 %v2102, 7
    %v2104 = vsub.s32 0, %v2103
    %v2105 = vrot.slane %v59, %v2104
    %v2107 = vsel %vm82, %v2100, 0
    %v2110 = vsel %vm82, %v2101, 0
    %2112 = vmatprep.subr.mxu0 0.0
    %2113 = vmatpush1.msra.mxu0 0.0
    %2114 = vmatprep.subr.mxu0 0.0
    %2115 = vmatpush1.msra.mxu0 0.0
    %2116 = vmatprep.subr.mxu0 0.0
    %2117 = vmatpush1.msra.mxu0 0.0
    %2118 = vmatprep.subr.mxu0 0.0
    %2119 = vmatpush1.msra.mxu0 0.0
    %2120 = vmatprep.subr.mxu0 0.0
    %2121 = vmatpush1.msra.mxu0 0.0
    %2122 = vmatprep.subr.mxu0 0.0
    %2123 = vmatpush1.msra.mxu0 0.0
    %2124 = vmatprep.subr.mxu0 0.0
    %2125 = vmatpush1.msra.mxu0 0.0
    %2126 = vmatprep.subr.mxu0 0.0
    %2127 = vmatpush1.msra.mxu0 0.0
    %2128 = vmatprep.subr.mxu0 0.0
    %2129 = vmatpush1.msra.mxu0 0.0
    %2130 = vmatprep.subr.mxu0 0.0
    %2131 = vmatpush1.msra.mxu0 0.0
    %2132 = vmatprep.subr.mxu0 0.0
    %2133 = vmatpush1.msra.mxu0 0.0
    %2134 = vmatprep.subr.mxu0 0.0
    %2135 = vmatpush1.msra.mxu0 0.0
    %2136 = vmatprep.subr.mxu0 0.0
    %2137 = vmatpush1.msra.mxu0 %v49
    %2138 = vmatprep.subr.mxu0 0.0
    %2139 = vmatpush1.msra.mxu0 %v48
    %2140 = vmatprep.subr.mxu0 0.0
    %2141 = vmatpush1.msra.mxu0 %v47
    %2142 = vmatprep.subr.mxu0 0.0
    %2143 = vmatpush1.msra.mxu0 %v46
    %2144 = vmatprep.subr.mxu0 0.0
    %2145 = vmatpush2.msra.mxu0 0.0
    %2146 = vmatprep.subr.mxu0 0.0
    %2147 = vmatpush2.msra.mxu0 0.0
    %2148 = vmatprep.subr.mxu0 0.0
    %2149 = vmatpush2.msra.mxu0 0.0
    %2150 = vmatprep.subr.mxu0 0.0
    %2151 = vmatpush2.msra.mxu0 0.0
    %2152 = vmatprep.subr.mxu0 0.0
    %2153 = vmatpush2.msra.mxu0 0.0
    %2154 = vmatprep.subr.mxu0 0.0
    %2155 = vmatpush2.msra.mxu0 0.0
    %2156 = vmatprep.subr.mxu0 0.0
    %2157 = vmatpush2.msra.mxu0 0.0
    %2158 = vmatprep.subr.mxu0 0.0
    %2159 = vmatpush2.msra.mxu0 0.0
    %2160 = vmatprep.subr.mxu0 0.0
    %2161 = vmatpush2.msra.mxu0 0.0
    %2162 = vmatprep.subr.mxu0 0.0
    %2163 = vmatpush2.msra.mxu0 0.0
    %2164 = vmatprep.subr.mxu0 0.0
    %2165 = vmatpush2.msra.mxu0 0.0
    %2166 = vmatprep.subr.mxu0 0.0
    %2167 = vmatpush2.msra.mxu0 0.0
    %2168 = vmatprep.subr.mxu0 0.0
    %2169 = vmatpush2.msra.mxu0 0.0
    %2170 = vmatprep.subr.mxu0 0.0
    %2171 = vmatpush2.msra.mxu0 0.0
    %2172 = vmatprep.subr.mxu0 0.0
    %2173 = vmatpush2.msra.mxu0 0.0
    %2174 = vmatprep.subr.mxu0 0.0
    %2175 = vmatpush2.msra.mxu0 0.0
    %2176 = vmatprep.mubr.f32.mxu0 0.0
    %2177 = vmatmul.mubr.f32.gmra.mxu0 %v2107
    %v2178 = vpop.f32.mrf.mxu0
    %v2179 = vadd.f32 %v2105, %v2178
    %v2180 = vpop.f32.mrf.mxu0
    %2181 = vmatprep.mubr.f32.mxu0 0.0
    %2182 = vmatmul.mubr.f32.gmra.mxu0 %v2110
    %v2183 = vpop.f32.mrf.mxu0
    %v2184 = vadd.f32 %v2105, %v2183
    %v2185 = vpop.f32.mrf.mxu0
    %2186 = vdwg.mxu0
    %v2187 = vlaneseq
    %v2188 = vshrl.u32 %v2187, 7
    %v2189 = vsub.s32 0, %v2188
    %v2190 = vrot.slane %v60, %v2189
    %v2192 = vsel %vm82, %v2179, 0
    %v2195 = vsel %vm82, %v2184, 0
    %2197 = vmatprep.subr.mxu0 0.0
    %2198 = vmatpush1.msra.mxu0 0.0
    %2199 = vmatprep.subr.mxu0 0.0
    %2200 = vmatpush1.msra.mxu0 0.0
    %2201 = vmatprep.subr.mxu0 0.0
    %2202 = vmatpush1.msra.mxu0 0.0
    %2203 = vmatprep.subr.mxu0 0.0
    %2204 = vmatpush1.msra.mxu0 0.0
    %2205 = vmatprep.subr.mxu0 0.0
    %2206 = vmatpush1.msra.mxu0 0.0
    %2207 = vmatprep.subr.mxu0 0.0
    %2208 = vmatpush1.msra.mxu0 0.0
    %2209 = vmatprep.subr.mxu0 0.0
    %2210 = vmatpush1.msra.mxu0 0.0
    %2211 = vmatprep.subr.mxu0 0.0
    %2212 = vmatpush1.msra.mxu0 0.0
    %2213 = vmatprep.subr.mxu0 0.0
    %2214 = vmatpush1.msra.mxu0 0.0
    %2215 = vmatprep.subr.mxu0 0.0
    %2216 = vmatpush1.msra.mxu0 0.0
    %2217 = vmatprep.subr.mxu0 0.0
    %2218 = vmatpush1.msra.mxu0 0.0
    %2219 = vmatprep.subr.mxu0 0.0
    %2220 = vmatpush1.msra.mxu0 0.0
    %2221 = vmatprep.subr.mxu0 0.0
    %2222 = vmatpush1.msra.mxu0 %v53
    %2223 = vmatprep.subr.mxu0 0.0
    %2224 = vmatpush1.msra.mxu0 %v52
    %2225 = vmatprep.subr.mxu0 0.0
    %2226 = vmatpush1.msra.mxu0 %v51
    %2227 = vmatprep.subr.mxu0 0.0
    %2228 = vmatpush1.msra.mxu0 %v50
    %2229 = vmatprep.subr.mxu0 0.0
    %2230 = vmatpush2.msra.mxu0 0.0
    %2231 = vmatprep.subr.mxu0 0.0
    %2232 = vmatpush2.msra.mxu0 0.0
    %2233 = vmatprep.subr.mxu0 0.0
    %2234 = vmatpush2.msra.mxu0 0.0
    %2235 = vmatprep.subr.mxu0 0.0
    %2236 = vmatpush2.msra.mxu0 0.0
    %2237 = vmatprep.subr.mxu0 0.0
    %2238 = vmatpush2.msra.mxu0 0.0
    %2239 = vmatprep.subr.mxu0 0.0
    %2240 = vmatpush2.msra.mxu0 0.0
    %2241 = vmatprep.subr.mxu0 0.0
    %2242 = vmatpush2.msra.mxu0 0.0
    %2243 = vmatprep.subr.mxu0 0.0
    %2244 = vmatpush2.msra.mxu0 0.0
    %2245 = vmatprep.subr.mxu0 0.0
    %2246 = vmatpush2.msra.mxu0 0.0
    %2247 = vmatprep.subr.mxu0 0.0
    %2248 = vmatpush2.msra.mxu0 0.0
    %2249 = vmatprep.subr.mxu0 0.0
    %2250 = vmatpush2.msra.mxu0 0.0
    %2251 = vmatprep.subr.mxu0 0.0
    %2252 = vmatpush2.msra.mxu0 0.0
    %2253 = vmatprep.subr.mxu0 0.0
    %2254 = vmatpush2.msra.mxu0 0.0
    %2255 = vmatprep.subr.mxu0 0.0
    %2256 = vmatpush2.msra.mxu0 0.0
    %2257 = vmatprep.subr.mxu0 0.0
    %2258 = vmatpush2.msra.mxu0 0.0
    %2259 = vmatprep.subr.mxu0 0.0
    %2260 = vmatpush2.msra.mxu0 0.0
    %2261 = vmatprep.mubr.f32.mxu0 0.0
    %2262 = vmatmul.mubr.f32.gmra.mxu0 %v2192
    %v2263 = vpop.f32.mrf.mxu0
    %v2264 = vadd.f32 %v2190, %v2263
    %v2265 = vpop.f32.mrf.mxu0
    %2266 = vmatprep.mubr.f32.mxu0 0.0
    %2267 = vmatmul.mubr.f32.gmra.mxu0 %v2195
    %v2268 = vpop.f32.mrf.mxu0
    %v2269 = vadd.f32 %v2190, %v2268
    %v2270 = vpop.f32.mrf.mxu0
    %2271 = vdwg.mxu0
    %v2272 = vadd.f32 %v2100, %v2264
    %v2273 = vadd.f32 %v2101, %v2269
    %2274 = vst.msk [vmem:[#allocation5] sm:$0xff] %vm82, %v2272
    %2275 = vst.msk [vmem:[#allocation5 + $0x8] sm:$0xff] %vm82, %v2273
    // Predicated region
    $region14: #{transformer_decoder_layer.1} parent=1 // pred_check
      _
    $region15: #{transformer_decoder_layer.1} parent=1 // pred_check_branch
      %2277 = sbr.rel (0) target = $region17
    $region16: #{transformer_decoder_layer.1} parent=1 // pred_region
      %s2279 = ssub.s32 256, 256
      %2280 = vsyncadd [#allocation4], %s2279
      %s2281 = sshll.u32 [#allocation5], 4
      %s2282 = int_to_ptr.vmem [resolvable:$true] %s2281
      %2287 = dma.vmem_to_hbm [thread:$0]  %s2282, 256, %s2, [#allocation4], 128, 128, 8
    $region17: #{transformer_decoder_layer.1} parent=1 // pred_fallthru
      _
    // Predicated region
    $region18: #{transformer_decoder_layer.1} parent=1 // pred_check
      _
    $region19: #{transformer_decoder_layer.1} parent=1 // pred_check_branch
      %2289 = sbr.rel (0) target = $region21
    $region20: #{transformer_decoder_layer.1} parent=1 // pred_region
      %2290 = dma.done [#allocation4], 256
    $region21: #{transformer_decoder_layer.1} parent=1 // pred_fallthru
      _
    %2291 = vsyncpa [#allocation3], 1
    %2292 = vsyncpa [#allocation4], 1

</llo_original>
